<compile_context>
chip_gen: v7x
topology: tpu7x:2x2x1
jax: 0.10.0
libtpu: 0.0.40
codegen_flags: <defaults>
</compile_context>

<pallas_src>
import numpy as np
import jax
import jax.numpy as jnp
from jax.experimental import pallas as pl
from jax.experimental.pallas import tpu as pltpu


# ----------------------------------------------------------------------------
# Pallas kernel: masked cross entropy for a block of Rb shifted rows across the
# whole batch.  Each row r uses its own vocab window [lo_r, hi_r) and global
# label lab[b, r] (-100 = ignore).
# ----------------------------------------------------------------------------
def _tabular_row_ce_kernel(x_ref, lo_ref, hi_ref, lab_ref, o_ref):
    x = x_ref[...].astype(jnp.float32)                  # (B, Rb, V), upcast after load
    lab = lab_ref[...]                                  # (B, Rb, 1) int32, global ids
    lo = lo_ref[...][None]                              # (1, Rb, 1)
    hi = hi_ref[...][None]                              # (1, Rb, 1)

    v = x.shape[-1]
    vid = jax.lax.broadcasted_iota(jnp.int32, (1, 1, v), 2)      # global vocab ids

    neg = jnp.float32(-1e30)
    valid = (vid >= lo) & (vid < hi)                    # (1, Rb, V) per-row field window
    xm = jnp.where(valid, x, neg)                       # (B, Rb, V)

    m = jnp.max(xm, axis=-1, keepdims=True)             # (B, Rb, 1)
    s = jnp.sum(jnp.exp(xm - m), axis=-1, keepdims=True)
    tgt = jnp.sum(jnp.where(vid == lab, x, 0.0), axis=-1, keepdims=True)
    lse = m + jnp.log(s)

    loss = jnp.where(lab[..., 0] == -100, 0.0, (lse - tgt)[..., 0])   # (B, Rb)
    o_ref[...] = loss.T                                  # lane-dense (Rb, B) slab


def tabular_ce_pallas(lm_logits, row_lo, row_hi, lab_rows, rb, nblk):
    B, P, V = lm_logits.shape
    rows_pad = nblk * rb
    return pl.pallas_call(
        _tabular_row_ce_kernel,
        grid=(nblk,),
        in_specs=[
            pl.BlockSpec((B, rb, V), lambda i: (0, i, 0)),   # Rb dense rows, full vocab
            pl.BlockSpec((rb, 1), lambda i: (i, 0)),         # per-row window lo
            pl.BlockSpec((rb, 1), lambda i: (i, 0)),         # per-row window hi
            pl.BlockSpec((B, rb, 1), lambda i: (0, i, 0)),   # per-row global labels
        ],
        out_specs=pl.BlockSpec((rb, B), lambda i: (i, 0)),
        out_shape=jax.ShapeDtypeStruct((rows_pad, B), jnp.float32),
        compiler_params=pltpu.CompilerParams(
            dimension_semantics=("parallel",),               # independent blocks (v7x megacore)
            vmem_limit_bytes=32 * 1024 * 1024),
    )(lm_logits, row_lo, row_hi, lab_rows)


# ----------------------------------------------------------------------------
# __init__ equivalent: build the column / vocab index tables deterministically.
# ----------------------------------------------------------------------------
def build_tables(n_positions, field_lens, n_special):
    F = len(field_lens)
    seq_len = n_positions - 1
    gmin, gmax = [], []
    start = n_special
    for L in field_lens:
        gmin.append(start)
        gmax.append(start + L)
        start += L
    col_ids, col_ids_labels = [], []
    for f in range(F):
        ci = list(range(f, seq_len, F))
        cl = list(range(f - 1, seq_len, F))
        if f == 0:
            cl = cl[1:]
        if len(ci) < len(cl):
            ci.append(ci[-1] + F)
        if len(cl) < len(ci):
            cl.append(cl[-1] + F)
        col_ids.append(ci)
        col_ids_labels.append(cl)
    return (np.array(col_ids), np.array(col_ids_labels),
            np.array(gmin), np.array(gmax),
            np.array(field_lens), start)


# ----------------------------------------------------------------------------
# forward() equivalent (thin JAX glue; the big logits tensor is passed to the
# kernel untouched — no slice / pad / transpose copies).
# ----------------------------------------------------------------------------
def tabular_loss_forward(lm_logits, labels, col_ids, col_ids_labels,
                         gmin, gmax, reduction="mean", max_block_rows=None):
    B, P, V = lm_logits.shape
    F, T = col_ids.shape
    assert F * T == P - 1, "round-robin layout needs (n_positions-1) % n_fields == 0"
    FT = F * T

    rows = np.asarray(col_ids, np.int64)                  # (F, T) shifted-logit rows
    labp = np.asarray(col_ids_labels, np.int64) + 1       # (F, T) label positions in `labels`
    gmin = np.asarray(gmin, np.int64)
    gmax = np.asarray(gmax, np.int64)

    # Bounds / coverage guards (VMEM-side OOB is not runtime-checked).
    flat = np.sort(rows.reshape(-1))
    assert flat[0] >= 0 and flat[-1] <= P - 2 and np.array_equal(flat, np.arange(FT))
    assert labp.min() >= 0 and labp.max() <= P - 1

    # --- block-row sizing: dtype-dependent sublane unit + VMEM budget ---------
    itemsize = jnp.dtype(lm_logits.dtype).itemsize
    unit = max(8, 32 // itemsize)                         # 8 f32, 16 bf16, 32 int8
    per_row = 2 * B * V * itemsize + 2 * B * 512 + 6 * 512   # dbl-buffered blocks
    budget = 10 * 1024 * 1024
    rb_budget = max(unit, (budget // per_row) // unit * unit)
    rb = min(int(-(-FT // unit)) * unit, int(rb_budget))
    if max_block_rows is not None:
        rb = min(rb, max(unit, (int(max_block_rows) // unit) * unit))
    nblk = -(-FT // rb)
    rows_pad = nblk * rb

    # --- tiny per-row tables (numpy scatter from col_ids / col_ids_labels) ----
    row_lo = np.zeros((rows_pad, 1), np.int32)
    row_hi = np.zeros((rows_pad, 1), np.int32)            # lo == hi == 0 -> padded row
    lab_pos = np.zeros((rows_pad,), np.int32)
    row_valid = np.zeros((rows_pad,), bool)
    rflat = rows.reshape(-1)
    row_lo[rflat, 0] = np.repeat(gmin, T)
    row_hi[rflat, 0] = np.repeat(gmax, T)
    lab_pos[rflat] = labp.reshape(-1)
    row_valid[rflat] = True

    labels = jnp.asarray(labels)
    lab_rows = jnp.take(labels, jnp.asarray(lab_pos), axis=1)          # (B, rows_pad)
    lab_rows = jnp.where(jnp.asarray(row_valid)[None, :], lab_rows, -100)
    lab_rows = lab_rows.astype(jnp.int32)[..., None]                   # (B, rows_pad, 1)

    losses = tabular_ce_pallas(lm_logits,
                               jnp.asarray(row_lo), jnp.asarray(row_hi),
                               lab_rows, rb, nblk)                     # (rows_pad, B)
    losses = losses[:FT]                                               # (FT, B)

    if reduction == "none":
        # matches torch.cat of per-field (B, T) loss matrices along dim 0
        per_field = losses[jnp.asarray(rflat), :]                      # (F*T, B), (f,t)-major
        return jnp.transpose(per_field.reshape(F, T, B), (0, 2, 1)).reshape(F * B, T)
    pos = losses > 0.0                                                 # matches losses[losses > 0]
    return jnp.sum(jnp.where(pos, losses, 0.0)) / jnp.sum(pos.astype(jnp.float32))


# ----------------------------------------------------------------------------
# Pure-numpy reference mirroring the PyTorch forward exactly.
# ----------------------------------------------------------------------------
def reference_forward(lm_logits, labels, col_ids, col_ids_labels, gmin, gmax):
    shift_logits = np.asarray(lm_logits)[:, :-1, :]
    shift_labels = np.asarray(labels)[:, 1:]
    F = col_ids.shape[0]
    per_field = []
    for f in range(F):
        lg = shift_logits[:, col_ids[f], gmin[f]:gmax[f]]
        lb = shift_labels[:, col_ids_labels[f]]
        local = np.where(lb == -100, -100, np.clip(lb - gmin[f], 0, None))
        x = lg - lg.max(-1, keepdims=True)
        logp = x - np.log(np.exp(x).sum(-1, keepdims=True))
        g = np.take_along_axis(logp, np.clip(local, 0, None)[..., None], -1)[..., 0]
        per_field.append(np.where(local == -100, 0.0, -g))
    losses = np.concatenate(per_field, axis=0)
    mean = losses[losses > 0].mean()
    return losses, mean


if __name__ == "__main__":
    # Small synthetic "EHR vocab": 3 special tokens + 4 fields, V = 256.
    # seq_len = 64, F = 4 -> T = 16 table rows per field; max_block_rows=32 so
    # the grid has 2 row-blocks and the pipelined path is exercised.
    B, n_positions = 4, 65
    field_lens = [60, 83, 70, 40]
    n_special = 3
    col_ids, col_ids_labels, gmin, gmax, vlen, V = build_tables(
        n_positions, field_lens, n_special)
    F = len(field_lens)

    key = jax.random.PRNGKey(0)
    k1, k2, k3 = jax.random.split(key, 3)
    # Feed bf16 logits: the kernel upcasts to f32 only after the VMEM load.
    lm_logits = jax.random.normal(k1, (B, n_positions, V), jnp.float32).astype(jnp.bfloat16)

    # Tabular labels: position p holds a token from field (p % F); ~20% ignored.
    fld = np.arange(n_positions) % F
    lo, hi = gmin[fld], gmax[fld]
    u = np.asarray(jax.random.uniform(k2, (B, n_positions)))
    lab = (lo + np.floor(u * (hi - lo))).astype(np.int32)
    drop = np.asarray(jax.random.uniform(k3, (B, n_positions))) < 0.2
    labels = jnp.asarray(np.where(drop, -100, lab).astype(np.int32))

    losses_none = tabular_loss_forward(lm_logits, labels, col_ids, col_ids_labels,
                                       gmin, gmax, reduction="none", max_block_rows=32)
    loss_mean = tabular_loss_forward(lm_logits, labels, col_ids, col_ids_labels,
                                     gmin, gmax, reduction="mean", max_block_rows=32)
    jax.block_until_ready((losses_none, loss_mean))

    # Reference uses the same bf16-rounded values promoted to f32.
    logits_f32 = np.asarray(lm_logits).astype(np.float32)
    ref_losses, ref_mean = reference_forward(logits_f32, labels, col_ids,
                                             col_ids_labels, gmin, gmax)
    np.testing.assert_allclose(np.asarray(losses_none), ref_losses,
                               rtol=1e-4, atol=1e-5)
    np.testing.assert_allclose(float(loss_mean), float(ref_mean),
                               rtol=1e-4, atol=1e-5)
    print("KERNEL_OK")
</pallas_src>

<mosaic_0001>
module attributes {stable_mosaic.version = 11 : i64} {
  func.func @_tabular_row_ce_kernel(%arg0: i32, %arg1: memref<4x32x256xbf16, #tpu.memory_space<vmem>>, %arg2: memref<32x1xi32, #tpu.memory_space<vmem>>, %arg3: memref<32x1xi32, #tpu.memory_space<vmem>>, %arg4: memref<4x32x1xi32, #tpu.memory_space<vmem>>, %arg5: memref<32x4xf32, #tpu.memory_space<vmem>>) attributes {dimension_semantics = [#tpu.dimension_semantics<parallel>], iteration_bounds = array<i64: 2>, scalar_prefetch = 0 : i64, scratch_operands = 0 : i64, tpu.core_type = #tpu.core_type<tc>, window_params = [{transform_indices = @transform_0, window_bounds = array<i64: 4, 32, 256>}, {transform_indices = @transform_1, window_bounds = array<i64: 32, 1>}, {transform_indices = @transform_2, window_bounds = array<i64: 32, 1>}, {transform_indices = @transform_3, window_bounds = array<i64: 4, 32, 1>}, {transform_indices = @transform_4, window_bounds = array<i64: 32, 4>}]} {
    %c0 = arith.constant 0 : index
    %c0_0 = arith.constant 0 : index
    %c0_1 = arith.constant 0 : index
    %0 = vector.load %arg1[%c0, %c0_0, %c0_1] : memref<4x32x256xbf16, #tpu.memory_space<vmem>>, vector<4x32x256xbf16>
    %1 = arith.extf %0 : vector<4x32x256xbf16> to vector<4x32x256xf32>
    %c0_2 = arith.constant 0 : index
    %c0_3 = arith.constant 0 : index
    %c0_4 = arith.constant 0 : index
    %2 = vector.load %arg4[%c0_2, %c0_3, %c0_4] : memref<4x32x1xi32, #tpu.memory_space<vmem>>, vector<4x32x1xi32>
    %c0_5 = arith.constant 0 : index
    %c0_6 = arith.constant 0 : index
    %3 = vector.load %arg2[%c0_5, %c0_6] : memref<32x1xi32, #tpu.memory_space<vmem>>, vector<32x1xi32>
    %4 = vector.shape_cast %3 : vector<32x1xi32> to vector<1x32x1xi32>
    %c0_7 = arith.constant 0 : index
    %c0_8 = arith.constant 0 : index
    %5 = vector.load %arg3[%c0_7, %c0_8] : memref<32x1xi32, #tpu.memory_space<vmem>>, vector<32x1xi32>
    %6 = vector.shape_cast %5 : vector<32x1xi32> to vector<1x32x1xi32>
    %7 = tpu.iota {dimensions = array<i32: 2>} : vector<1x1x256xi32>
    %8 = vector.broadcast %7 : vector<1x1x256xi32> to vector<1x32x256xi32>
    %9 = vector.broadcast %4 : vector<1x32x1xi32> to vector<1x32x256xi32>
    %10 = arith.cmpi sge, %8, %9 : vector<1x32x256xi32>
    %11 = vector.broadcast %7 : vector<1x1x256xi32> to vector<1x32x256xi32>
    %12 = vector.broadcast %6 : vector<1x32x1xi32> to vector<1x32x256xi32>
    %13 = arith.cmpi slt, %11, %12 : vector<1x32x256xi32>
    %14 = arith.andi %10, %13 : vector<1x32x256xi1>
    %cst = arith.constant -1.000000e+30 : f32
    %15 = vector.shape_cast %14 : vector<1x32x256xi1> to vector<1x32x256xi1>
    %16 = vector.broadcast %15 : vector<1x32x256xi1> to vector<4x32x256xi1>
    %17 = vector.broadcast %cst : f32 to vector<4x32x256xf32>
    %18 = arith.select %16, %1, %17 : vector<4x32x256xi1>, vector<4x32x256xf32>
    %cst_9 = arith.constant dense<0xFF800000> : vector<4x32xf32>
    %19 = vector.multi_reduction <maximumf>, %18, %cst_9 [2] : vector<4x32x256xf32> to vector<4x32xf32>
    %20 = vector.shape_cast %19 : vector<4x32xf32> to vector<4x32x1xf32>
    %21 = vector.broadcast %20 : vector<4x32x1xf32> to vector<4x32x256xf32>
    %22 = arith.subf %18, %21 : vector<4x32x256xf32>
    %23 = math.exp %22 : vector<4x32x256xf32>
    %cst_10 = arith.constant dense<0.000000e+00> : vector<4x32xf32>
    %24 = vector.multi_reduction <add>, %23, %cst_10 [2] : vector<4x32x256xf32> to vector<4x32xf32>
    %25 = vector.shape_cast %24 : vector<4x32xf32> to vector<4x32x1xf32>
    %26 = vector.broadcast %7 : vector<1x1x256xi32> to vector<4x32x256xi32>
    %27 = vector.broadcast %2 : vector<4x32x1xi32> to vector<4x32x256xi32>
    %28 = arith.cmpi eq, %26, %27 : vector<4x32x256xi32>
    %cst_11 = arith.constant 0.000000e+00 : f32
    %29 = vector.broadcast %cst_11 : f32 to vector<4x32x256xf32>
    %30 = arith.select %28, %1, %29 : vector<4x32x256xi1>, vector<4x32x256xf32>
    %cst_12 = arith.constant dense<0.000000e+00> : vector<4x32xf32>
    %31 = vector.multi_reduction <add>, %30, %cst_12 [2] : vector<4x32x256xf32> to vector<4x32xf32>
    %32 = vector.shape_cast %31 : vector<4x32xf32> to vector<4x32x1xf32>
    %33 = math.log %25 : vector<4x32x1xf32>
    %34 = arith.addf %20, %33 : vector<4x32x1xf32>
    %35 = vector.shape_cast %2 : vector<4x32x1xi32> to vector<4x32xi32>
    %c-100_i32 = arith.constant -100 : i32
    %36 = vector.broadcast %c-100_i32 : i32 to vector<4x32xi32>
    %37 = arith.cmpi eq, %35, %36 : vector<4x32xi32>
    %38 = arith.subf %34, %32 : vector<4x32x1xf32>
    %39 = vector.shape_cast %38 : vector<4x32x1xf32> to vector<4x32xf32>
    %cst_13 = arith.constant 0.000000e+00 : f32
    %40 = vector.broadcast %cst_13 : f32 to vector<4x32xf32>
    %41 = arith.select %37, %40, %39 : vector<4x32xi1>, vector<4x32xf32>
    %42 = tpu.transpose %41, [1, 0] : vector<4x32xf32> -> vector<32x4xf32>
    %c0_14 = arith.constant 0 : index
    %c0_15 = arith.constant 0 : index
    %43 = vector.load %arg5[%c0_14, %c0_15] : memref<32x4xf32, #tpu.memory_space<vmem>>, vector<32x4xf32>
    tpu.vector_store %arg5[%c0_14, %c0_15], %42 {strides = array<i32>} : memref<32x4xf32, #tpu.memory_space<vmem>>, vector<32x4xf32>,
    return
  }
  func.func @transform_0(%arg0: i32) -> (i32, i32, i32) {
    %c0_i32 = arith.constant 0 : i32
    %c0_i32_0 = arith.constant 0 : i32
    %c0_i32_1 = arith.constant 0 : i32
    return %c0_i32, %arg0, %c0_i32_0 : i32, i32, i32
  }
  func.func @transform_1(%arg0: i32) -> (i32, i32) {
    %c0_i32 = arith.constant 0 : i32
    %c0_i32_0 = arith.constant 0 : i32
    return %arg0, %c0_i32 : i32, i32
  }
  func.func @transform_2(%arg0: i32) -> (i32, i32) {
    %c0_i32 = arith.constant 0 : i32
    %c0_i32_0 = arith.constant 0 : i32
    return %arg0, %c0_i32 : i32, i32
  }
  func.func @transform_3(%arg0: i32) -> (i32, i32, i32) {
    %c0_i32 = arith.constant 0 : i32
    %c0_i32_0 = arith.constant 0 : i32
    %c0_i32_1 = arith.constant 0 : i32
    return %c0_i32, %arg0, %c0_i32_0 : i32, i32, i32
  }
  func.func @transform_4(%arg0: i32) -> (i32, i32) {
    %c0_i32 = arith.constant 0 : i32
    %c0_i32_0 = arith.constant 0 : i32
    return %arg0, %c0_i32 : i32, i32
  }
}

</mosaic_0001>

<llo_original>
// kernel: tpu_custom_call.1
$region0: #{tpu_custom_call.1}
  #allocation0 [shape = 'u32[]', space=smem, size = 0x4, offset = 0x4, fixed_abs, tag = 'smem constant byte address 0x4 - core index']
  #allocation1 [shape = 'u32[144,128]{1,0:T(1,128)}', space=vmem, size = 0x12000, scoped, tag = 'internal scratch']
  %s0 = inlined_call_operand.vmem [shape: bf16[4,65,256], index: 0, kind: input, shape index: {}]
  %s1 = inlined_call_operand.vmem [shape: s32[64,1], index: 1, kind: input, shape index: {}]
  %s2 = inlined_call_operand.vmem [shape: s32[64,1], index: 2, kind: input, shape index: {}]
  %s3 = inlined_call_operand.vmem [shape: s32[4,64,1], index: 3, kind: input, shape index: {}]
  %s4 = inlined_call_operand.vmem [shape: f32[64,4], index: 4, kind: output, shape index: {}]
  %s5 = sld [smem:[#allocation0]]
  $region139: #{tpu_custom_call.1} parent=0
    _
  %s7 = ssub.s32 1, %s5
  %s8 = scalar_select 0, %s7, %s5
  $region1: #{tpu_custom_call.1} parent=0
    #allocation2 [shape = 'u8[131072]{0}', space=vmem, size = 0x20000, scoped, tag = 'input window, operand 0']
    #allocation3 [shape = 'u8[131072]{0}', space=vmem, size = 0x20000, scoped, tag = 'input window, operand 3']
    loop: start=0, step=1, limit=4
    $region2: #{tpu_custom_call.1} parent=1 // loop_pre_header
      _
    $region3: #{tpu_custom_call.1} parent=1 // loop_header
      %s10 = sphi 0, %s14
      %p11 = scmp.ge.s32.totalorder %s10, 4
      %s20 = sphi 0, %s22
      %s23 = sphi 0, %s20
      %s24 = sphi 0, %s23
      %s40 = sphi 0, %s24
      %s46 = sphi 0, %s48
      %s49 = sphi 0, %s46
      %s50 = sphi 0, %s49
      %s66 = sphi 0, %s50
      %s72 = sphi 0, %s74
      %s75 = sphi 0, %s72
      %s76 = sphi 0, %s75
      %s92 = sphi 0, %s76
      %s98 = sphi 0, %s100
      %s101 = sphi 0, %s98
      %s102 = sphi 0, %s101
      %s118 = sphi 0, %s102
      %s124 = sphi 0, %s126
      %s127 = sphi 0, %s124
      %s128 = sphi 0, %s127
      %s144 = sphi 0, %s128
    $region4: #{tpu_custom_call.1} parent=1 // loop_header_branch
      %13 = sbr.rel (%p11) target = $region8
    $region5: #{tpu_custom_call.1} parent=1 // loop_body
      %s15 = ssub.s32 %s10, 1
      %s16 = ssub.s32 %s10, 2
      %s17 = sadd.s32 %s10, 1
      %s18 = ssub.s32 %s10, %s17
      %p19 = scmp.eq.s32.totalorder %s18, 0
      %s21 = sadd.s32 %s20, 1
      %s22 = scalar_select %p19, %s20, %s21
      %p25 = pneg %p19
      %p26 = scmp.eq.s32.totalorder %s10, 1
      %p27 = por %p25, %p26
      %p28 = scmp.ne.s32.totalorder %s20, %s23
      %p29 = scmp.eq.s32.totalorder %s10, 0
      %p30 = por %p28, %p29
      %p31 = scmp.ne.s32.totalorder %s20, %s23
      %p32 = scmp.eq.s32.totalorder %s15, 1
      %p33 = por %p31, %p32
      %p34 = scmp.ne.s32.totalorder %s23, %s24
      %p35 = scmp.eq.s32.totalorder %s15, 0
      %p36 = por %p34, %p35
      %p37 = scmp.ne.s32.totalorder %s23, %s24
      %p38 = scmp.eq.s32.totalorder %s16, 1
      %p39 = por %p37, %p38
      %p41 = scmp.ne.s32.totalorder %s24, %s40
      %p42 = scmp.eq.s32.totalorder %s16, 0
      %p43 = por %p41, %p42
      %s44 = ssub.s32 %s10, %s17
      %p45 = scmp.eq.s32.totalorder %s44, 0
      %s47 = sadd.s32 %s46, 1
      %s48 = scalar_select %p45, %s46, %s47
      %p51 = pneg %p45
      %p52 = scmp.eq.s32.totalorder %s10, 1
      %p53 = por %p51, %p52
      %p54 = scmp.ne.s32.totalorder %s46, %s49
      %p55 = scmp.eq.s32.totalorder %s10, 0
      %p56 = por %p54, %p55
      %p57 = scmp.ne.s32.totalorder %s46, %s49
      %p58 = scmp.eq.s32.totalorder %s15, 1
      %p59 = por %p57, %p58
      %p60 = scmp.ne.s32.totalorder %s49, %s50
      %p61 = scmp.eq.s32.totalorder %s15, 0
      %p62 = por %p60, %p61
      %p63 = scmp.ne.s32.totalorder %s49, %s50
      %p64 = scmp.eq.s32.totalorder %s16, 1
      %p65 = por %p63, %p64
      %p67 = scmp.ne.s32.totalorder %s50, %s66
      %p68 = scmp.eq.s32.totalorder %s16, 0
      %p69 = por %p67, %p68
      %s70 = ssub.s32 %s10, %s17
      %p71 = scmp.eq.s32.totalorder %s70, 0
      %s73 = sadd.s32 %s72, 1
      %s74 = scalar_select %p71, %s72, %s73
      %p77 = pneg %p71
      %p78 = scmp.eq.s32.totalorder %s10, 1
      %p79 = por %p77, %p78
      %p80 = scmp.ne.s32.totalorder %s72, %s75
      %p81 = scmp.eq.s32.totalorder %s10, 0
      %p82 = por %p80, %p81
      %p83 = scmp.ne.s32.totalorder %s72, %s75
      %p84 = scmp.eq.s32.totalorder %s15, 1
      %p85 = por %p83, %p84
      %p86 = scmp.ne.s32.totalorder %s75, %s76
      %p87 = scmp.eq.s32.totalorder %s15, 0
      %p88 = por %p86, %p87
      %p89 = scmp.ne.s32.totalorder %s75, %s76
      %p90 = scmp.eq.s32.totalorder %s16, 1
      %p91 = por %p89, %p90
      %p93 = scmp.ne.s32.totalorder %s76, %s92
      %p94 = scmp.eq.s32.totalorder %s16, 0
      %p95 = por %p93, %p94
      %s96 = ssub.s32 %s10, %s17
      %p97 = scmp.eq.s32.totalorder %s96, 0
      %s99 = sadd.s32 %s98, 1
      %s100 = scalar_select %p97, %s98, %s99
      %p103 = pneg %p97
      %p104 = scmp.eq.s32.totalorder %s10, 1
      %p105 = por %p103, %p104
      %p106 = scmp.ne.s32.totalorder %s98, %s101
      %p107 = scmp.eq.s32.totalorder %s10, 0
      %p108 = por %p106, %p107
      %p109 = scmp.ne.s32.totalorder %s98, %s101
      %p110 = scmp.eq.s32.totalorder %s15, 1
      %p111 = por %p109, %p110
      %p112 = scmp.ne.s32.totalorder %s101, %s102
      %p113 = scmp.eq.s32.totalorder %s15, 0
      %p114 = por %p112, %p113
      %p115 = scmp.ne.s32.totalorder %s101, %s102
      %p116 = scmp.eq.s32.totalorder %s16, 1
      %p117 = por %p115, %p116
      %p119 = scmp.ne.s32.totalorder %s102, %s118
      %p120 = scmp.eq.s32.totalorder %s16, 0
      %p121 = por %p119, %p120
      %s122 = ssub.s32 %s10, %s17
      %p123 = scmp.eq.s32.totalorder %s122, 0
      %s125 = sadd.s32 %s124, 1
      %s126 = scalar_select %p123, %s124, %s125
      %p129 = pneg %p123
      %p130 = scmp.eq.s32.totalorder %s10, 1
      %p131 = por %p129, %p130
      %p132 = scmp.ne.s32.totalorder %s124, %s127
      %p133 = scmp.eq.s32.totalorder %s10, 0
      %p134 = por %p132, %p133
      %p135 = scmp.ne.s32.totalorder %s124, %s127
      %p136 = scmp.eq.s32.totalorder %s15, 1
      %p137 = por %p135, %p136
      %p138 = scmp.ne.s32.totalorder %s127, %s128
      %p139 = scmp.eq.s32.totalorder %s15, 0
      %p140 = por %p138, %p139
      %p141 = scmp.ne.s32.totalorder %s127, %s128
      %p142 = scmp.eq.s32.totalorder %s16, 1
      %p143 = por %p141, %p142
      %p145 = scmp.ne.s32.totalorder %s128, %s144
      %p146 = scmp.eq.s32.totalorder %s16, 0
      %p147 = por %p145, %p146
      %p148 = scmp.le.s32.totalorder 1, %s10
      %p149 = scmp.lt.s32.totalorder %s10, 3
      %p150 = pnand %p148, %p149
      %p151 = pneg %p150
      // Predicated region
      $region9: #{tpu_custom_call.1} parent=5 // pred_check
        _
      $region10: #{tpu_custom_call.1} parent=5 // pred_check_branch
        %153 = sbr.rel (%p150) target = $region12
      $region11: #{tpu_custom_call.1} parent=5 // pred_region
        %s154 = ssub.s32 %s10, 1
      $region12: #{tpu_custom_call.1} parent=5 // pred_fallthru
        _
      %p155 = scmp.lt.s32.totalorder %s10, 2
      // Predicated region
      $region13: #{tpu_custom_call.1} parent=5 // pred_check
        %p156 = pneg %p155
      $region14: #{tpu_custom_call.1} parent=5 // pred_check_branch
        %158 = sbr.rel (%p156) target = $region16
      $region15: #{tpu_custom_call.1} parent=5 // pred_region
        // Predicated region
        $region17: #{tpu_custom_call.1} parent=15 // pred_check
          %p159 = pneg %p30
        $region18: #{tpu_custom_call.1} parent=15 // pred_check_branch
          %161 = sbr.rel (%p159) target = $region20
        $region19: #{tpu_custom_call.1} parent=15 // pred_region
          %s162 = sand.u32 %s20, 1
          %s163 = sand.u32 %s20, 1
          %s164 = smul.addr %s163, 128
          %s165 = scalar_lea.vmem [#allocation2], %s164
          %s166 = smul.u32 4, %s10
          %s167 = ssub.s32 9, %s166
          %p168 = scmp.lt.s32.totalorder %s167, 4
          %s169 = scalar_select %p168, %s167, 4
          %s170 = smul.u32 256, %s169
          %s171 = smul.u32 %s170, 2
          %p172 = scmp.ne.s32.totalorder 0, %s171
          %s173 = smul.addr %s166, 2
          %s174 = smul.addr %s173, 4
          %s175 = scalar_lea.vmem %s0, %s174
          // Predicated region
          $region21: #{tpu_custom_call.1} parent=19 // pred_check
            %p176 = pneg %p172
          $region22: #{tpu_custom_call.1} parent=19 // pred_check_branch
            %178 = sbr.rel (%p176) target = $region24
          $region23: #{tpu_custom_call.1} parent=19 // pred_region
            // Predicated region
            $region25: #{tpu_custom_call.1} parent=23 // pred_check
              _
            $region26: #{tpu_custom_call.1} parent=23 // pred_check_branch
              %180 = sbr.rel (0) target = $region28
            $region27: #{tpu_custom_call.1} parent=23 // pred_region
              // Predicated region
              $region47: #{tpu_custom_call.1} parent=27 // pred_check
                _
              $region48: #{tpu_custom_call.1} parent=27 // pred_check_branch
                %265 = sbr.rel (0) target = $region50
              $region49: #{tpu_custom_call.1} parent=27 // pred_region
                %s266 = sshrl.u32 %s169, 2
                // While loop
                $region51: #{tpu_custom_call.1} parent=49 // loop_pre_header
                  _
                $region52: #{tpu_custom_call.1} parent=49 // loop_header
                  %s268 = sphi 0, %s270
                  %p269 = scmp.ge.s32.totalorder %s268, %s266
                  %s273 = sphi 0, %s310
                  %s274 = sphi %s175, %s313
                  %s275 = sphi %s165, %s314
                $region53: #{tpu_custom_call.1} parent=49 // loop_header_branch
                  %272 = sbr.rel (%p269) target = $region57
                $region54: #{tpu_custom_call.1} parent=49 // loop_body
                  %v276 = vld [vmem:[%s274] sm:$0xff]
                  %277 = vst [vmem:[%s275] sm:$0xff] %v276
                  %v278 = vld [vmem:[%s274 + $0x8] sm:$0xff]
                  %279 = vst [vmem:[%s275 + $0x8] sm:$0xff] %v278
                  %v280 = vld [vmem:[%s274 + $0x10] sm:$0xff]
                  %281 = vst [vmem:[%s275 + $0x10] sm:$0xff] %v280
                  %v282 = vld [vmem:[%s274 + $0x18] sm:$0xff]
                  %283 = vst [vmem:[%s275 + $0x18] sm:$0xff] %v282
                  %v284 = vld [vmem:[%s274 + $0x48] sm:$0xff]
                  %285 = vst [vmem:[%s275 + $0x20] sm:$0xff] %v284
                  %v286 = vld [vmem:[%s274 + $0x50] sm:$0xff]
                  %287 = vst [vmem:[%s275 + $0x28] sm:$0xff] %v286
                  %v288 = vld [vmem:[%s274 + $0x58] sm:$0xff]
                  %289 = vst [vmem:[%s275 + $0x30] sm:$0xff] %v288
                  %v290 = vld [vmem:[%s274 + $0x60] sm:$0xff]
                  %291 = vst [vmem:[%s275 + $0x38] sm:$0xff] %v290
                  %v292 = vld [vmem:[%s274 + $0x90] sm:$0xff]
                  %293 = vst [vmem:[%s275 + $0x40] sm:$0xff] %v292
                  %v294 = vld [vmem:[%s274 + $0x98] sm:$0xff]
                  %295 = vst [vmem:[%s275 + $0x48] sm:$0xff] %v294
                  %v296 = vld [vmem:[%s274 + $0xa0] sm:$0xff]
                  %297 = vst [vmem:[%s275 + $0x50] sm:$0xff] %v296
                  %v298 = vld [vmem:[%s274 + $0xa8] sm:$0xff]
                  %299 = vst [vmem:[%s275 + $0x58] sm:$0xff] %v298
                  %v300 = vld [vmem:[%s274 + $0xd8] sm:$0xff]
                  %301 = vst [vmem:[%s275 + $0x60] sm:$0xff] %v300
                  %v302 = vld [vmem:[%s274 + $0xe0] sm:$0xff]
                  %303 = vst [vmem:[%s275 + $0x68] sm:$0xff] %v302
                  %v304 = vld [vmem:[%s274 + $0xe8] sm:$0xff]
                  %305 = vst [vmem:[%s275 + $0x70] sm:$0xff] %v304
                  %v306 = vld [vmem:[%s274 + $0xf0] sm:$0xff]
                  %307 = vst [vmem:[%s275 + $0x78] sm:$0xff] %v306
                  %s308 = sadd.s32 1, %s273
                  %p309 = scmp.ge.s32.totalorder %s308, %s266
                  %s310 = scalar_select %p309, 0, %s308
                  %s311 = smul.u32 %s310, 32
                  %s312 = smul.u32 %s310, 32
                  %s313 = scalar_lea.vmem %s175, %s311
                  %s314 = scalar_lea.vmem %s165, %s312 [#allocation2]
                $region55: #{tpu_custom_call.1} parent=49 // loop_footer
                  %s270 = sadd.s32 %s268, 1
                $region56: #{tpu_custom_call.1} parent=49 // loop_footer_branch
                  %267 = sbr.rel target = $region52
                $region57: #{tpu_custom_call.1} parent=49 // loop_exit
                  _
                %s315 = sshrl.u32 %s169, 2
                %s316 = sand.u32 %s169, 3
                %s317 = smul.u32 %s315, 4
                %s318 = smul.u32 8, %s317
                %s319 = scalar_lea.vmem %s175, %s318
                %s320 = smul.u32 8, %s317
                %s321 = scalar_lea.vmem %s165, %s320 [#allocation2]
                // While loop
                $region58: #{tpu_custom_call.1} parent=49 // loop_pre_header
                  _
                $region59: #{tpu_custom_call.1} parent=49 // loop_header
                  %s323 = sphi 0, %s325
                  %p324 = scmp.ge.s32.totalorder %s323, %s316
                  %s328 = sphi 0, %s341
                  %s329 = sphi %s319, %s344
                  %s330 = sphi %s321, %s345
                $region60: #{tpu_custom_call.1} parent=49 // loop_header_branch
                  %327 = sbr.rel (%p324) target = $region64
                $region61: #{tpu_custom_call.1} parent=49 // loop_body
                  %v331 = vld [vmem:[%s329] sm:$0xff]
                  %332 = vst [vmem:[%s330] sm:$0xff] %v331
                  %v333 = vld [vmem:[%s329 + $0x48] sm:$0xff]
                  %334 = vst [vmem:[%s330 + $0x20] sm:$0xff] %v333
                  %v335 = vld [vmem:[%s329 + $0x90] sm:$0xff]
                  %336 = vst [vmem:[%s330 + $0x40] sm:$0xff] %v335
                  %v337 = vld [vmem:[%s329 + $0xd8] sm:$0xff]
                  %338 = vst [vmem:[%s330 + $0x60] sm:$0xff] %v337
                  %s339 = sadd.s32 1, %s328
                  %p340 = scmp.ge.s32.totalorder %s339, %s316
                  %s341 = scalar_select %p340, 0, %s339
                  %s342 = smul.u32 %s341, 8
                  %s343 = smul.u32 %s341, 8
                  %s344 = scalar_lea.vmem %s319, %s342
                  %s345 = scalar_lea.vmem %s321, %s343 [#allocation2]
                $region62: #{tpu_custom_call.1} parent=49 // loop_footer
                  %s325 = sadd.s32 %s323, 1
                $region63: #{tpu_custom_call.1} parent=49 // loop_footer_branch
                  %322 = sbr.rel target = $region59
                $region64: #{tpu_custom_call.1} parent=49 // loop_exit
                  _
              $region50: #{tpu_custom_call.1} parent=27 // pred_fallthru
                _
              // Predicated region
              $region65: #{tpu_custom_call.1} parent=27 // pred_check
                _
              $region66: #{tpu_custom_call.1} parent=27 // pred_check_branch
                %347 = sbr.rel target = $region68
              $region67: #{tpu_custom_call.1} parent=27 // pred_region
                _
              $region68: #{tpu_custom_call.1} parent=27 // pred_fallthru
                _
            $region28: #{tpu_custom_call.1} parent=23 // pred_fallthru
              _
            // Predicated region
            $region29: #{tpu_custom_call.1} parent=23 // pred_check
              _
            $region30: #{tpu_custom_call.1} parent=23 // pred_check_branch
              %182 = sbr.rel target = $region32
            $region31: #{tpu_custom_call.1} parent=23 // pred_region
              %s184 = sshrl.u32 %s169, 2
              // While loop
              $region33: #{tpu_custom_call.1} parent=31 // loop_pre_header
                _
              $region34: #{tpu_custom_call.1} parent=31 // loop_header
                %s186 = sphi 0, %s188
                %p187 = scmp.ge.s32.totalorder %s186, %s184
                %s191 = sphi 0, %s228
                %s192 = sphi %s175, %s231
                %s193 = sphi %s165, %s232
              $region35: #{tpu_custom_call.1} parent=31 // loop_header_branch
                %190 = sbr.rel (%p187) target = $region39
              $region36: #{tpu_custom_call.1} parent=31 // loop_body
                %v194 = vld [vmem:[%s192] sm:$0xff]
                %195 = vst [vmem:[%s193] sm:$0xff] %v194
                %v196 = vld [vmem:[%s192 + $0x8] sm:$0xff]
                %197 = vst [vmem:[%s193 + $0x8] sm:$0xff] %v196
                %v198 = vld [vmem:[%s192 + $0x10] sm:$0xff]
                %199 = vst [vmem:[%s193 + $0x10] sm:$0xff] %v198
                %v200 = vld [vmem:[%s192 + $0x18] sm:$0xff]
                %201 = vst [vmem:[%s193 + $0x18] sm:$0xff] %v200
                %v202 = vld [vmem:[%s192 + $0x48] sm:$0xff]
                %203 = vst [vmem:[%s193 + $0x20] sm:$0xff] %v202
                %v204 = vld [vmem:[%s192 + $0x50] sm:$0xff]
                %205 = vst [vmem:[%s193 + $0x28] sm:$0xff] %v204
                %v206 = vld [vmem:[%s192 + $0x58] sm:$0xff]
                %207 = vst [vmem:[%s193 + $0x30] sm:$0xff] %v206
                %v208 = vld [vmem:[%s192 + $0x60] sm:$0xff]
                %209 = vst [vmem:[%s193 + $0x38] sm:$0xff] %v208
                %v210 = vld [vmem:[%s192 + $0x90] sm:$0xff]
                %211 = vst [vmem:[%s193 + $0x40] sm:$0xff] %v210
                %v212 = vld [vmem:[%s192 + $0x98] sm:$0xff]
                %213 = vst [vmem:[%s193 + $0x48] sm:$0xff] %v212
                %v214 = vld [vmem:[%s192 + $0xa0] sm:$0xff]
                %215 = vst [vmem:[%s193 + $0x50] sm:$0xff] %v214
                %v216 = vld [vmem:[%s192 + $0xa8] sm:$0xff]
                %217 = vst [vmem:[%s193 + $0x58] sm:$0xff] %v216
                %v218 = vld [vmem:[%s192 + $0xd8] sm:$0xff]
                %219 = vst [vmem:[%s193 + $0x60] sm:$0xff] %v218
                %v220 = vld [vmem:[%s192 + $0xe0] sm:$0xff]
                %221 = vst [vmem:[%s193 + $0x68] sm:$0xff] %v220
                %v222 = vld [vmem:[%s192 + $0xe8] sm:$0xff]
                %223 = vst [vmem:[%s193 + $0x70] sm:$0xff] %v222
                %v224 = vld [vmem:[%s192 + $0xf0] sm:$0xff]
                %225 = vst [vmem:[%s193 + $0x78] sm:$0xff] %v224
                %s226 = sadd.s32 1, %s191
                %p227 = scmp.ge.s32.totalorder %s226, %s184
                %s228 = scalar_select %p227, 0, %s226
                %s229 = smul.u32 %s228, 32
                %s230 = smul.u32 %s228, 32
                %s231 = scalar_lea.vmem %s175, %s229
                %s232 = scalar_lea.vmem %s165, %s230 [#allocation2]
              $region37: #{tpu_custom_call.1} parent=31 // loop_footer
                %s188 = sadd.s32 %s186, 1
              $region38: #{tpu_custom_call.1} parent=31 // loop_footer_branch
                %185 = sbr.rel target = $region34
              $region39: #{tpu_custom_call.1} parent=31 // loop_exit
                _
              %s233 = sshrl.u32 %s169, 2
              %s234 = sand.u32 %s169, 3
              %s235 = smul.u32 %s233, 4
              %s236 = smul.u32 8, %s235
              %s237 = scalar_lea.vmem %s175, %s236
              %s238 = smul.u32 8, %s235
              %s239 = scalar_lea.vmem %s165, %s238 [#allocation2]
              // While loop
              $region40: #{tpu_custom_call.1} parent=31 // loop_pre_header
                _
              $region41: #{tpu_custom_call.1} parent=31 // loop_header
                %s241 = sphi 0, %s243
                %p242 = scmp.ge.s32.totalorder %s241, %s234
                %s246 = sphi 0, %s259
                %s247 = sphi %s237, %s262
                %s248 = sphi %s239, %s263
              $region42: #{tpu_custom_call.1} parent=31 // loop_header_branch
                %245 = sbr.rel (%p242) target = $region46
              $region43: #{tpu_custom_call.1} parent=31 // loop_body
                %v249 = vld [vmem:[%s247] sm:$0xff]
                %250 = vst [vmem:[%s248] sm:$0xff] %v249
                %v251 = vld [vmem:[%s247 + $0x48] sm:$0xff]
                %252 = vst [vmem:[%s248 + $0x20] sm:$0xff] %v251
                %v253 = vld [vmem:[%s247 + $0x90] sm:$0xff]
                %254 = vst [vmem:[%s248 + $0x40] sm:$0xff] %v253
                %v255 = vld [vmem:[%s247 + $0xd8] sm:$0xff]
                %256 = vst [vmem:[%s248 + $0x60] sm:$0xff] %v255
                %s257 = sadd.s32 1, %s246
                %p258 = scmp.ge.s32.totalorder %s257, %s234
                %s259 = scalar_select %p258, 0, %s257
                %s260 = smul.u32 %s259, 8
                %s261 = smul.u32 %s259, 8
                %s262 = scalar_lea.vmem %s237, %s260
                %s263 = scalar_lea.vmem %s239, %s261 [#allocation2]
              $region44: #{tpu_custom_call.1} parent=31 // loop_footer
                %s243 = sadd.s32 %s241, 1
              $region45: #{tpu_custom_call.1} parent=31 // loop_footer_branch
                %240 = sbr.rel target = $region41
              $region46: #{tpu_custom_call.1} parent=31 // loop_exit
                _
            $region32: #{tpu_custom_call.1} parent=23 // pred_fallthru
              _
          $region24: #{tpu_custom_call.1} parent=19 // pred_fallthru
            _
          %348 = vnop
        $region20: #{tpu_custom_call.1} parent=15 // pred_fallthru
          _
        // Predicated region
        $region69: #{tpu_custom_call.1} parent=15 // pred_check
          %p349 = pneg %p56
        $region70: #{tpu_custom_call.1} parent=15 // pred_check_branch
          %351 = sbr.rel (%p349) target = $region72
        $region71: #{tpu_custom_call.1} parent=15 // pred_region
          %s352 = smul.u32 4, %s10
          %p353 = scmp.lt.s32.totalorder %s352, 7
          %s354 = scalar_select %p353, %s352, 7
          %s355 = smul.addr %s354, 8
          %s356 = scalar_lea.vmem %s1, %s355
          %s357 = smul.u32 4, %s10
        $region72: #{tpu_custom_call.1} parent=15 // pred_fallthru
          _
        // Predicated region
        $region73: #{tpu_custom_call.1} parent=15 // pred_check
          %p358 = pneg %p82
        $region74: #{tpu_custom_call.1} parent=15 // pred_check_branch
          %360 = sbr.rel (%p358) target = $region76
        $region75: #{tpu_custom_call.1} parent=15 // pred_region
          %s361 = smul.u32 4, %s10
          %p362 = scmp.lt.s32.totalorder %s361, 7
          %s363 = scalar_select %p362, %s361, 7
          %s364 = smul.addr %s363, 8
          %s365 = scalar_lea.vmem %s2, %s364
          %s366 = smul.u32 4, %s10
        $region76: #{tpu_custom_call.1} parent=15 // pred_fallthru
          _
        // Predicated region
        $region77: #{tpu_custom_call.1} parent=15 // pred_check
          %p367 = pneg %p108
        $region78: #{tpu_custom_call.1} parent=15 // pred_check_branch
          %369 = sbr.rel (%p367) target = $region80
        $region79: #{tpu_custom_call.1} parent=15 // pred_region
          %s370 = sand.u32 %s98, 1
          %s371 = sand.u32 %s98, 1
          %s372 = smul.addr %s371, 128
          %s373 = scalar_lea.vmem [#allocation3], %s372
          %s374 = smul.u32 4, %s10
          %s375 = smul.addr %s374, 8
          %s376 = scalar_lea.vmem %s3, %s375
          // Predicated region
          $region81: #{tpu_custom_call.1} parent=79 // pred_check
            _
          $region82: #{tpu_custom_call.1} parent=79 // pred_check_branch
            %378 = sbr.rel (0) target = $region84
          $region83: #{tpu_custom_call.1} parent=79 // pred_region
            // Predicated region
            $region85: #{tpu_custom_call.1} parent=83 // pred_check
              _
            $region86: #{tpu_custom_call.1} parent=83 // pred_check_branch
              %380 = sbr.rel (0) target = $region88
            $region87: #{tpu_custom_call.1} parent=83 // pred_region
              // Predicated region
              $region100: #{tpu_custom_call.1} parent=87 // pred_check
                _
              $region101: #{tpu_custom_call.1} parent=87 // pred_check_branch
                %425 = sbr.rel (0) target = $region103
              $region102: #{tpu_custom_call.1} parent=87 // pred_region
                loop: start=0, step=1, limit=1
                $region104: #{tpu_custom_call.1} parent=102 // loop_pre_header
                  _
                $region105: #{tpu_custom_call.1} parent=102 // loop_header
                  %s427 = sphi 0, %s431
                  %p428 = scmp.ge.s32.totalorder %s427, 1
                  %s432 = sphi %s376, %s376
                  %s433 = sphi %s373, %s373
                $region106: #{tpu_custom_call.1} parent=102 // loop_header_branch
                  %430 = sbr.rel (%p428) target = $region110
                $region107: #{tpu_custom_call.1} parent=102 // loop_body
                  %v434 = vld [vmem:[%s432] sm:$0xff]
                  %435 = vst [vmem:[%s433] sm:$0xff] %v434
                  %v436 = vld [vmem:[%s432 + $0x8] sm:$0xff]
                  %437 = vst [vmem:[%s433 + $0x8] sm:$0xff] %v436
                  %v438 = vld [vmem:[%s432 + $0x10] sm:$0xff]
                  %439 = vst [vmem:[%s433 + $0x10] sm:$0xff] %v438
                  %v440 = vld [vmem:[%s432 + $0x18] sm:$0xff]
                  %441 = vst [vmem:[%s433 + $0x18] sm:$0xff] %v440
                  %v442 = vld [vmem:[%s432 + $0x40] sm:$0xff]
                  %443 = vst [vmem:[%s433 + $0x20] sm:$0xff] %v442
                  %v444 = vld [vmem:[%s432 + $0x48] sm:$0xff]
                  %445 = vst [vmem:[%s433 + $0x28] sm:$0xff] %v444
                  %v446 = vld [vmem:[%s432 + $0x50] sm:$0xff]
                  %447 = vst [vmem:[%s433 + $0x30] sm:$0xff] %v446
                  %v448 = vld [vmem:[%s432 + $0x58] sm:$0xff]
                  %449 = vst [vmem:[%s433 + $0x38] sm:$0xff] %v448
                  %v450 = vld [vmem:[%s432 + $0x80] sm:$0xff]
                  %451 = vst [vmem:[%s433 + $0x40] sm:$0xff] %v450
                  %v452 = vld [vmem:[%s432 + $0x88] sm:$0xff]
                  %453 = vst [vmem:[%s433 + $0x48] sm:$0xff] %v452
                  %v454 = vld [vmem:[%s432 + $0x90] sm:$0xff]
                  %455 = vst [vmem:[%s433 + $0x50] sm:$0xff] %v454
                  %v456 = vld [vmem:[%s432 + $0x98] sm:$0xff]
                  %457 = vst [vmem:[%s433 + $0x58] sm:$0xff] %v456
                  %v458 = vld [vmem:[%s432 + $0xc0] sm:$0xff]
                  %459 = vst [vmem:[%s433 + $0x60] sm:$0xff] %v458
                  %v460 = vld [vmem:[%s432 + $0xc8] sm:$0xff]
                  %461 = vst [vmem:[%s433 + $0x68] sm:$0xff] %v460
                  %v462 = vld [vmem:[%s432 + $0xd0] sm:$0xff]
                  %463 = vst [vmem:[%s433 + $0x70] sm:$0xff] %v462
                  %v464 = vld [vmem:[%s432 + $0xd8] sm:$0xff]
                  %465 = vst [vmem:[%s433 + $0x78] sm:$0xff] %v464
                $region108: #{tpu_custom_call.1} parent=102 // loop_footer
                  %s431 = sadd.s32 1, %s427
                $region109: #{tpu_custom_call.1} parent=102 // loop_footer_branch
                  %426 = sbr.rel target = $region105
                $region110: #{tpu_custom_call.1} parent=102 // loop_exit
                  _
              $region103: #{tpu_custom_call.1} parent=87 // pred_fallthru
                _
              // Predicated region
              $region111: #{tpu_custom_call.1} parent=87 // pred_check
                _
              $region112: #{tpu_custom_call.1} parent=87 // pred_check_branch
                %467 = sbr.rel target = $region114
              $region113: #{tpu_custom_call.1} parent=87 // pred_region
                _
              $region114: #{tpu_custom_call.1} parent=87 // pred_fallthru
                _
            $region88: #{tpu_custom_call.1} parent=83 // pred_fallthru
              _
            // Predicated region
            $region89: #{tpu_custom_call.1} parent=83 // pred_check
              _
            $region90: #{tpu_custom_call.1} parent=83 // pred_check_branch
              %382 = sbr.rel target = $region92
            $region91: #{tpu_custom_call.1} parent=83 // pred_region
              loop: start=0, step=1, limit=1
              $region93: #{tpu_custom_call.1} parent=91 // loop_pre_header
                _
              $region94: #{tpu_custom_call.1} parent=91 // loop_header
                %s385 = sphi 0, %s389
                %p386 = scmp.ge.s32.totalorder %s385, 1
                %s390 = sphi %s376, %s376
                %s391 = sphi %s373, %s373
              $region95: #{tpu_custom_call.1} parent=91 // loop_header_branch
                %388 = sbr.rel (%p386) target = $region99
              $region96: #{tpu_custom_call.1} parent=91 // loop_body
                %v392 = vld [vmem:[%s390] sm:$0xff]
                %393 = vst [vmem:[%s391] sm:$0xff] %v392
                %v394 = vld [vmem:[%s390 + $0x8] sm:$0xff]
                %395 = vst [vmem:[%s391 + $0x8] sm:$0xff] %v394
                %v396 = vld [vmem:[%s390 + $0x10] sm:$0xff]
                %397 = vst [vmem:[%s391 + $0x10] sm:$0xff] %v396
                %v398 = vld [vmem:[%s390 + $0x18] sm:$0xff]
                %399 = vst [vmem:[%s391 + $0x18] sm:$0xff] %v398
                %v400 = vld [vmem:[%s390 + $0x40] sm:$0xff]
                %401 = vst [vmem:[%s391 + $0x20] sm:$0xff] %v400
                %v402 = vld [vmem:[%s390 + $0x48] sm:$0xff]
                %403 = vst [vmem:[%s391 + $0x28] sm:$0xff] %v402
                %v404 = vld [vmem:[%s390 + $0x50] sm:$0xff]
                %405 = vst [vmem:[%s391 + $0x30] sm:$0xff] %v404
                %v406 = vld [vmem:[%s390 + $0x58] sm:$0xff]
                %407 = vst [vmem:[%s391 + $0x38] sm:$0xff] %v406
                %v408 = vld [vmem:[%s390 + $0x80] sm:$0xff]
                %409 = vst [vmem:[%s391 + $0x40] sm:$0xff] %v408
                %v410 = vld [vmem:[%s390 + $0x88] sm:$0xff]
                %411 = vst [vmem:[%s391 + $0x48] sm:$0xff] %v410
                %v412 = vld [vmem:[%s390 + $0x90] sm:$0xff]
                %413 = vst [vmem:[%s391 + $0x50] sm:$0xff] %v412
                %v414 = vld [vmem:[%s390 + $0x98] sm:$0xff]
                %415 = vst [vmem:[%s391 + $0x58] sm:$0xff] %v414
                %v416 = vld [vmem:[%s390 + $0xc0] sm:$0xff]
                %417 = vst [vmem:[%s391 + $0x60] sm:$0xff] %v416
                %v418 = vld [vmem:[%s390 + $0xc8] sm:$0xff]
                %419 = vst [vmem:[%s391 + $0x68] sm:$0xff] %v418
                %v420 = vld [vmem:[%s390 + $0xd0] sm:$0xff]
                %421 = vst [vmem:[%s391 + $0x70] sm:$0xff] %v420
                %v422 = vld [vmem:[%s390 + $0xd8] sm:$0xff]
                %423 = vst [vmem:[%s391 + $0x78] sm:$0xff] %v422
              $region97: #{tpu_custom_call.1} parent=91 // loop_footer
                %s389 = sadd.s32 1, %s385
              $region98: #{tpu_custom_call.1} parent=91 // loop_footer_branch
                %384 = sbr.rel target = $region94
              $region99: #{tpu_custom_call.1} parent=91 // loop_exit
                _
            $region92: #{tpu_custom_call.1} parent=83 // pred_fallthru
              _
          $region84: #{tpu_custom_call.1} parent=79 // pred_fallthru
            _
          %468 = vnop
        $region80: #{tpu_custom_call.1} parent=15 // pred_fallthru
          _
      $region16: #{tpu_custom_call.1} parent=5 // pred_fallthru
        _
      %p469 = scmp.le.s32.totalorder 1, %s10
      %p470 = scmp.lt.s32.totalorder %s10, 3
      %p471 = pnand %p469, %p470
      %p472 = pneg %p471
      // Predicated region
      $region115: #{tpu_custom_call.1} parent=5 // pred_check
        _
      $region116: #{tpu_custom_call.1} parent=5 // pred_check_branch
        %474 = sbr.rel (%p471) target = $region118
      $region117: #{tpu_custom_call.1} parent=5 // pred_region
        %s475 = ssub.s32 %s10, 1
        %s476 = sand.u32 %s23, 1
        %s477 = sand.u32 %s23, 1
        %s478 = smul.addr %s477, 128
        %s479 = scalar_lea.vmem [#allocation2], %s478
        // Predicated region
        $region119: #{tpu_custom_call.1} parent=117 // pred_check
          %p480 = pneg %p36
        $region120: #{tpu_custom_call.1} parent=117 // pred_check_branch
          %482 = sbr.rel (%p480) target = $region122
        $region121: #{tpu_custom_call.1} parent=117 // pred_region
          _
        $region122: #{tpu_custom_call.1} parent=117 // pred_fallthru
          _
        %s483 = sand.u32 %s101, 1
        %s484 = sand.u32 %s101, 1
        %s485 = smul.addr %s484, 128
        %s486 = scalar_lea.vmem [#allocation3], %s485
        // Predicated region
        $region123: #{tpu_custom_call.1} parent=117 // pred_check
          %p487 = pneg %p114
        $region124: #{tpu_custom_call.1} parent=117 // pred_check_branch
          %489 = sbr.rel (%p487) target = $region126
        $region125: #{tpu_custom_call.1} parent=117 // pred_region
          _
        $region126: #{tpu_custom_call.1} parent=117 // pred_fallthru
          _
        %s490 = sand.u32 %s23, 1
        %s491 = sand.u32 %s23, 1
        %s492 = smul.addr %s491, 128
        %s493 = scalar_lea.vmem [#allocation2], %s492
        %p494 = pneg %p36
        %p495 = pneg %p33
        %s496 = smul.u32 4, %s15
        %p497 = scmp.lt.s32.totalorder %s496, 7
        %s498 = scalar_select %p497, %s496, 7
        %s499 = smul.addr %s498, 8
        %s500 = scalar_lea.vmem %s1, %s499
        %p501 = pneg %p62
        %p502 = pneg %p59
        %s503 = smul.u32 4, %s15
        %p504 = scmp.lt.s32.totalorder %s503, 7
        %s505 = scalar_select %p504, %s503, 7
        %s506 = smul.addr %s505, 8
        %s507 = scalar_lea.vmem %s2, %s506
        %p508 = pneg %p88
        %p509 = pneg %p85
        %s510 = sand.u32 %s101, 1
        %s511 = sand.u32 %s101, 1
        %s512 = smul.addr %s511, 128
        %s513 = scalar_lea.vmem [#allocation3], %s512
        %p514 = pneg %p114
        %p515 = pneg %p111
        %p516 = pneg %p140
        %p517 = pneg %p137
        %s518 = smul.u32 4, %s15
        %p519 = scmp.lt.s32.totalorder %s518, 7
        %s520 = scalar_select %p519, %s518, 7
        %s521 = smul.addr %s520, 8
        %s522 = scalar_lea.vmem %s4, %s521
        %s523 = smul.u32 4, %s15
        %s524 = ssub.s32 9, %s523
        %p525 = scmp.lt.s32.totalorder %s524, 4
        %s526 = scalar_select %p525, %s524, 4
        %s527 = smul.u32 256, %s526
        %s528 = smul.u32 %s527, 2
        %s529 = smul.u32 4, %s15
        %p530 = scmp.lt.s32.totalorder %s529, 7
        %s531 = scalar_select %p530, %s529, 7
        %s532 = smul.addr %s531, 8
        %s533 = scalar_lea.vmem %s1, %s532
        %s534 = smul.u32 4, %s15
        %s535 = smul.u32 4, %s15
        %p536 = scmp.lt.s32.totalorder %s535, 7
        %s537 = scalar_select %p536, %s535, 7
        %s538 = smul.addr %s537, 8
        %s539 = scalar_lea.vmem %s2, %s538
        %s540 = smul.u32 4, %s15
        %s541 = smul.u32 4, %s15
        %s542 = smul.u32 4, %s15
        %p543 = scmp.lt.s32.totalorder %s542, 7
        %s544 = scalar_select %p543, %s542, 7
        %s545 = smul.addr %s544, 8
        %s546 = scalar_lea.vmem %s4, %s545
        %s547 = smul.u32 4, %s15
        %v548 = vld [vmem:[%s479] sm:$0xff]
        %v549 = vld [vmem:[%s479 + $0x8] sm:$0xff]
        %v550 = vld [vmem:[%s479 + $0x10] sm:$0xff]
        %v551 = vld [vmem:[%s479 + $0x18] sm:$0xff]
        %v552 = vld [vmem:[%s479 + $0x20] sm:$0xff]
        %v553 = vld [vmem:[%s479 + $0x28] sm:$0xff]
        %v554 = vld [vmem:[%s479 + $0x30] sm:$0xff]
        %v555 = vld [vmem:[%s479 + $0x38] sm:$0xff]
        %v556 = vld [vmem:[%s479 + $0x40] sm:$0xff]
        %v557 = vld [vmem:[%s479 + $0x48] sm:$0xff]
        %v558 = vld [vmem:[%s479 + $0x50] sm:$0xff]
        %v559 = vld [vmem:[%s479 + $0x58] sm:$0xff]
        %v560 = vld [vmem:[%s479 + $0x60] sm:$0xff]
        %v561 = vld [vmem:[%s479 + $0x68] sm:$0xff]
        %v562 = vld [vmem:[%s479 + $0x70] sm:$0xff]
        %v563 = vld [vmem:[%s479 + $0x78] sm:$0xff]
        %v564 = vunpack.c.l.bf16 %v548
        %v565 = vunpack.c.h.bf16 %v548
        %v566 = vunpack.c.l.bf16 %v549
        %v567 = vunpack.c.h.bf16 %v549
        %v568 = vunpack.c.l.bf16 %v550
        %v569 = vunpack.c.h.bf16 %v550
        %v570 = vunpack.c.l.bf16 %v551
        %v571 = vunpack.c.h.bf16 %v551
        %v572 = vunpack.c.l.bf16 %v552
        %v573 = vunpack.c.h.bf16 %v552
        %v574 = vunpack.c.l.bf16 %v553
        %v575 = vunpack.c.h.bf16 %v553
        %v576 = vunpack.c.l.bf16 %v554
        %v577 = vunpack.c.h.bf16 %v554
        %v578 = vunpack.c.l.bf16 %v555
        %v579 = vunpack.c.h.bf16 %v555
        %v580 = vunpack.c.l.bf16 %v556
        %v581 = vunpack.c.h.bf16 %v556
        %v582 = vunpack.c.l.bf16 %v557
        %v583 = vunpack.c.h.bf16 %v557
        %v584 = vunpack.c.l.bf16 %v558
        %v585 = vunpack.c.h.bf16 %v558
        %v586 = vunpack.c.l.bf16 %v559
        %v587 = vunpack.c.h.bf16 %v559
        %v588 = vunpack.c.l.bf16 %v560
        %v589 = vunpack.c.h.bf16 %v560
        %v590 = vunpack.c.l.bf16 %v561
        %v591 = vunpack.c.h.bf16 %v561
        %v592 = vunpack.c.l.bf16 %v562
        %v593 = vunpack.c.h.bf16 %v562
        %v594 = vunpack.c.l.bf16 %v563
        %v595 = vunpack.c.h.bf16 %v563
        %v596 = vld [vmem:[%s486] sm:$0xff]
        %v597 = vld [vmem:[%s486 + $0x8] sm:$0xff]
        %v598 = vld [vmem:[%s486 + $0x10] sm:$0xff]
        %v599 = vld [vmem:[%s486 + $0x18] sm:$0xff]
        %v600 = vld [vmem:[%s486 + $0x20] sm:$0xff]
        %v601 = vld [vmem:[%s486 + $0x28] sm:$0xff]
        %v602 = vld [vmem:[%s486 + $0x30] sm:$0xff]
        %v603 = vld [vmem:[%s486 + $0x38] sm:$0xff]
        %v604 = vld [vmem:[%s486 + $0x40] sm:$0xff]
        %v605 = vld [vmem:[%s486 + $0x48] sm:$0xff]
        %v606 = vld [vmem:[%s486 + $0x50] sm:$0xff]
        %v607 = vld [vmem:[%s486 + $0x58] sm:$0xff]
        %v608 = vld [vmem:[%s486 + $0x60] sm:$0xff]
        %v609 = vld [vmem:[%s486 + $0x68] sm:$0xff]
        %v610 = vld [vmem:[%s486 + $0x70] sm:$0xff]
        %v611 = vld [vmem:[%s486 + $0x78] sm:$0xff]
        %v612 = vld [vmem:[%s533] sm:$0xff]
        %v613 = vld [vmem:[%s533 + $0x8] sm:$0xff]
        %v614 = vld [vmem:[%s533 + $0x10] sm:$0xff]
        %v615 = vld [vmem:[%s533 + $0x18] sm:$0xff]
        %v616 = vld [vmem:[%s539] sm:$0xff]
        %v617 = vld [vmem:[%s539 + $0x8] sm:$0xff]
        %v618 = vld [vmem:[%s539 + $0x10] sm:$0xff]
        %v619 = vld [vmem:[%s539 + $0x18] sm:$0xff]
        %v620 = vlaneseq
        %v621 = vand.u32 %v620, 127
        %v622 = vadd.s32 %v621, 128
        %623 = vset.pattern.permute.xlu0 0
        %624 = vperm.xlu0 %623, %v612
        %v625 = vpop.permute.xlu0 %624
        %626 = vset.pattern.permute.xlu0 0
        %627 = vperm.xlu0 %626, %v613
        %v628 = vpop.permute.xlu0 %627
        %629 = vset.pattern.permute.xlu0 0
        %630 = vperm.xlu0 %629, %v614
        %v631 = vpop.permute.xlu0 %630
        %632 = vset.pattern.permute.xlu0 0
        %633 = vperm.xlu0 %632, %v615
        %v634 = vpop.permute.xlu0 %633
        %vm635 = vcmp.ge.s32.totalorder %v621, %v625
        %vm636 = vcmp.ge.s32.totalorder %v622, %v625
        %vm637 = vcmp.ge.s32.totalorder %v621, %v628
        %vm638 = vcmp.ge.s32.totalorder %v622, %v628
        %vm639 = vcmp.ge.s32.totalorder %v621, %v631
        %vm640 = vcmp.ge.s32.totalorder %v622, %v631
        %vm641 = vcmp.ge.s32.totalorder %v621, %v634
        %vm642 = vcmp.ge.s32.totalorder %v622, %v634
        %643 = vset.pattern.permute.xlu0 0
        %644 = vperm.xlu0 %643, %v616
        %v645 = vpop.permute.xlu0 %644
        %646 = vset.pattern.permute.xlu0 0
        %647 = vperm.xlu0 %646, %v617
        %v648 = vpop.permute.xlu0 %647
        %649 = vset.pattern.permute.xlu0 0
        %650 = vperm.xlu0 %649, %v618
        %v651 = vpop.permute.xlu0 %650
        %652 = vset.pattern.permute.xlu0 0
        %653 = vperm.xlu0 %652, %v619
        %v654 = vpop.permute.xlu0 %653
        %vm655 = vcmp.lt.s32.totalorder %v621, %v645
        %vm656 = vcmp.lt.s32.totalorder %v622, %v645
        %vm657 = vcmp.lt.s32.totalorder %v621, %v648
        %vm658 = vcmp.lt.s32.totalorder %v622, %v648
        %vm659 = vcmp.lt.s32.totalorder %v621, %v651
        %vm660 = vcmp.lt.s32.totalorder %v622, %v651
        %vm661 = vcmp.lt.s32.totalorder %v621, %v654
        %vm662 = vcmp.lt.s32.totalorder %v622, %v654
        %vm663 = vmand %vm635, %vm655
        %vm664 = vmand %vm636, %vm656
        %vm665 = vmand %vm637, %vm657
        %vm666 = vmand %vm638, %vm658
        %vm667 = vmand %vm639, %vm659
        %vm668 = vmand %vm640, %vm660
        %vm669 = vmand %vm641, %vm661
        %vm670 = vmand %vm642, %vm662
        %v671 = vsel %vm663, 1, 0
        %v672 = vsel %vm664, 1, 0
        %v673 = vsel %vm665, 1, 0
        %v674 = vsel %vm666, 1, 0
        %v675 = vsel %vm667, 1, 0
        %v676 = vsel %vm668, 1, 0
        %v677 = vsel %vm669, 1, 0
        %v678 = vsel %vm670, 1, 0
        %vm679 = vcmp.eq.s32.totalorder %v671, 1
        %vm680 = vcmp.eq.s32.totalorder %v672, 1
        %vm681 = vcmp.eq.s32.totalorder %v673, 1
        %vm682 = vcmp.eq.s32.totalorder %v674, 1
        %vm683 = vcmp.eq.s32.totalorder %v675, 1
        %vm684 = vcmp.eq.s32.totalorder %v676, 1
        %vm685 = vcmp.eq.s32.totalorder %v677, 1
        %vm686 = vcmp.eq.s32.totalorder %v678, 1
        %v687 = vsel %vm679, %v564, -1e+30
        %v688 = vsel %vm680, %v565, -1e+30
        %v689 = vsel %vm681, %v566, -1e+30
        %v690 = vsel %vm682, %v567, -1e+30
        %v691 = vsel %vm683, %v568, -1e+30
        %v692 = vsel %vm684, %v569, -1e+30
        %v693 = vsel %vm685, %v570, -1e+30
        %v694 = vsel %vm686, %v571, -1e+30
        %v695 = vsel %vm679, %v572, -1e+30
        %v696 = vsel %vm680, %v573, -1e+30
        %v697 = vsel %vm681, %v574, -1e+30
        %v698 = vsel %vm682, %v575, -1e+30
        %v699 = vsel %vm683, %v576, -1e+30
        %v700 = vsel %vm684, %v577, -1e+30
        %v701 = vsel %vm685, %v578, -1e+30
        %v702 = vsel %vm686, %v579, -1e+30
        %v703 = vsel %vm679, %v580, -1e+30
        %v704 = vsel %vm680, %v581, -1e+30
        %v705 = vsel %vm681, %v582, -1e+30
        %v706 = vsel %vm682, %v583, -1e+30
        %v707 = vsel %vm683, %v584, -1e+30
        %v708 = vsel %vm684, %v585, -1e+30
        %v709 = vsel %vm685, %v586, -1e+30
        %v710 = vsel %vm686, %v587, -1e+30
        %v711 = vsel %vm679, %v588, -1e+30
        %v712 = vsel %vm680, %v589, -1e+30
        %v713 = vsel %vm681, %v590, -1e+30
        %v714 = vsel %vm682, %v591, -1e+30
        %v715 = vsel %vm683, %v592, -1e+30
        %v716 = vsel %vm684, %v593, -1e+30
        %v717 = vsel %vm685, %v594, -1e+30
        %v718 = vsel %vm686, %v595, -1e+30
        %v719 = vmax.f32 %v687, %v688
        %720 = vmax.xlane.f32.xlu0 %v719
        %v721 = vpop.xlane.xlu0 %720
        %v722 = vmax.f32 %v689, %v690
        %723 = vmax.xlane.f32.xlu0 %v722
        %v724 = vpop.xlane.xlu0 %723
        %v725 = vmax.f32 %v691, %v692
        %726 = vmax.xlane.f32.xlu0 %v725
        %v727 = vpop.xlane.xlu0 %726
        %v728 = vmax.f32 %v693, %v694
        %729 = vmax.xlane.f32.xlu0 %v728
        %v730 = vpop.xlane.xlu0 %729
        %v731 = vmax.f32 %v695, %v696
        %732 = vmax.xlane.f32.xlu0 %v731
        %v733 = vpop.xlane.xlu0 %732
        %v734 = vmax.f32 %v697, %v698
        %735 = vmax.xlane.f32.xlu0 %v734
        %v736 = vpop.xlane.xlu0 %735
        %v737 = vmax.f32 %v699, %v700
        %738 = vmax.xlane.f32.xlu0 %v737
        %v739 = vpop.xlane.xlu0 %738
        %v740 = vmax.f32 %v701, %v702
        %741 = vmax.xlane.f32.xlu0 %v740
        %v742 = vpop.xlane.xlu0 %741
        %v743 = vmax.f32 %v703, %v704
        %744 = vmax.xlane.f32.xlu0 %v743
        %v745 = vpop.xlane.xlu0 %744
        %v746 = vmax.f32 %v705, %v706
        %747 = vmax.xlane.f32.xlu0 %v746
        %v748 = vpop.xlane.xlu0 %747
        %v749 = vmax.f32 %v707, %v708
        %750 = vmax.xlane.f32.xlu0 %v749
        %v751 = vpop.xlane.xlu0 %750
        %v752 = vmax.f32 %v709, %v710
        %753 = vmax.xlane.f32.xlu0 %v752
        %v754 = vpop.xlane.xlu0 %753
        %v755 = vmax.f32 %v711, %v712
        %756 = vmax.xlane.f32.xlu0 %v755
        %v757 = vpop.xlane.xlu0 %756
        %v758 = vmax.f32 %v713, %v714
        %759 = vmax.xlane.f32.xlu0 %v758
        %v760 = vpop.xlane.xlu0 %759
        %v761 = vmax.f32 %v715, %v716
        %762 = vmax.xlane.f32.xlu0 %v761
        %v763 = vpop.xlane.xlu0 %762
        %v764 = vmax.f32 %v717, %v718
        %765 = vmax.xlane.f32.xlu0 %v764
        %v766 = vpop.xlane.xlu0 %765
        %v767 = vsub.f32 %v687, %v721
        %v768 = vsub.f32 %v688, %v721
        %v769 = vsub.f32 %v689, %v724
        %v770 = vsub.f32 %v690, %v724
        %v771 = vsub.f32 %v691, %v727
        %v772 = vsub.f32 %v692, %v727
        %v773 = vsub.f32 %v693, %v730
        %v774 = vsub.f32 %v694, %v730
        %v775 = vsub.f32 %v695, %v733
        %v776 = vsub.f32 %v696, %v733
        %v777 = vsub.f32 %v697, %v736
        %v778 = vsub.f32 %v698, %v736
        %v779 = vsub.f32 %v699, %v739
        %v780 = vsub.f32 %v700, %v739
        %v781 = vsub.f32 %v701, %v742
        %v782 = vsub.f32 %v702, %v742
        %v783 = vsub.f32 %v703, %v745
        %v784 = vsub.f32 %v704, %v745
        %v785 = vsub.f32 %v705, %v748
        %v786 = vsub.f32 %v706, %v748
        %v787 = vsub.f32 %v707, %v751
        %v788 = vsub.f32 %v708, %v751
        %v789 = vsub.f32 %v709, %v754
        %v790 = vsub.f32 %v710, %v754
        %v791 = vsub.f32 %v711, %v757
        %v792 = vsub.f32 %v712, %v757
        %v793 = vsub.f32 %v713, %v760
        %v794 = vsub.f32 %v714, %v760
        %v795 = vsub.f32 %v715, %v763
        %v796 = vsub.f32 %v716, %v763
        %v797 = vsub.f32 %v717, %v766
        %v798 = vsub.f32 %v718, %v766
        %v799 = vmul.f32 %v767, 1.442695
        %v800 = vpow.pop %v799
        %v801 = vmul.f32 %v768, 1.442695
        %v802 = vpow.pop %v801
        %v803 = vmul.f32 %v769, 1.442695
        %v804 = vpow.pop %v803
        %v805 = vmul.f32 %v770, 1.442695
        %v806 = vpow.pop %v805
        %v807 = vmul.f32 %v771, 1.442695
        %v808 = vpow.pop %v807
        %v809 = vmul.f32 %v772, 1.442695
        %v810 = vpow.pop %v809
        %v811 = vmul.f32 %v773, 1.442695
        %v812 = vpow.pop %v811
        %v813 = vmul.f32 %v774, 1.442695
        %v814 = vpow.pop %v813
        %v815 = vmul.f32 %v775, 1.442695
        %v816 = vpow.pop %v815
        %v817 = vmul.f32 %v776, 1.442695
        %v818 = vpow.pop %v817
        %v819 = vmul.f32 %v777, 1.442695
        %v820 = vpow.pop %v819
        %v821 = vmul.f32 %v778, 1.442695
        %v822 = vpow.pop %v821
        %v823 = vmul.f32 %v779, 1.442695
        %v824 = vpow.pop %v823
        %v825 = vmul.f32 %v780, 1.442695
        %v826 = vpow.pop %v825
        %v827 = vmul.f32 %v781, 1.442695
        %v828 = vpow.pop %v827
        %v829 = vmul.f32 %v782, 1.442695
        %v830 = vpow.pop %v829
        %v831 = vmul.f32 %v783, 1.442695
        %v832 = vpow.pop %v831
        %v833 = vmul.f32 %v784, 1.442695
        %v834 = vpow.pop %v833
        %v835 = vmul.f32 %v785, 1.442695
        %v836 = vpow.pop %v835
        %v837 = vmul.f32 %v786, 1.442695
        %v838 = vpow.pop %v837
        %v839 = vmul.f32 %v787, 1.442695
        %v840 = vpow.pop %v839
        %v841 = vmul.f32 %v788, 1.442695
        %v842 = vpow.pop %v841
        %v843 = vmul.f32 %v789, 1.442695
        %v844 = vpow.pop %v843
        %v845 = vmul.f32 %v790, 1.442695
        %v846 = vpow.pop %v845
        %v847 = vmul.f32 %v791, 1.442695
        %v848 = vpow.pop %v847
        %v849 = vmul.f32 %v792, 1.442695
        %v850 = vpow.pop %v849
        %v851 = vmul.f32 %v793, 1.442695
        %v852 = vpow.pop %v851
        %v853 = vmul.f32 %v794, 1.442695
        %v854 = vpow.pop %v853
        %v855 = vmul.f32 %v795, 1.442695
        %v856 = vpow.pop %v855
        %v857 = vmul.f32 %v796, 1.442695
        %v858 = vpow.pop %v857
        %v859 = vmul.f32 %v797, 1.442695
        %v860 = vpow.pop %v859
        %v861 = vmul.f32 %v798, 1.442695
        %v862 = vpow.pop %v861
        %v863 = vadd.f32 %v800, %v802
        %864 = vadd.xlane.f32.xlu0 %v863
        %v865 = vpop.xlane.xlu0 %864
        %v866 = vadd.f32 %v804, %v806
        %867 = vadd.xlane.f32.xlu0 %v866
        %v868 = vpop.xlane.xlu0 %867
        %v869 = vadd.f32 %v808, %v810
        %870 = vadd.xlane.f32.xlu0 %v869
        %v871 = vpop.xlane.xlu0 %870
        %v872 = vadd.f32 %v812, %v814
        %873 = vadd.xlane.f32.xlu0 %v872
        %v874 = vpop.xlane.xlu0 %873
        %v875 = vadd.f32 %v816, %v818
        %876 = vadd.xlane.f32.xlu0 %v875
        %v877 = vpop.xlane.xlu0 %876
        %v878 = vadd.f32 %v820, %v822
        %879 = vadd.xlane.f32.xlu0 %v878
        %v880 = vpop.xlane.xlu0 %879
        %v881 = vadd.f32 %v824, %v826
        %882 = vadd.xlane.f32.xlu0 %v881
        %v883 = vpop.xlane.xlu0 %882
        %v884 = vadd.f32 %v828, %v830
        %885 = vadd.xlane.f32.xlu0 %v884
        %v886 = vpop.xlane.xlu0 %885
        %v887 = vadd.f32 %v832, %v834
        %888 = vadd.xlane.f32.xlu0 %v887
        %v889 = vpop.xlane.xlu0 %888
        %v890 = vadd.f32 %v836, %v838
        %891 = vadd.xlane.f32.xlu0 %v890
        %v892 = vpop.xlane.xlu0 %891
        %v893 = vadd.f32 %v840, %v842
        %894 = vadd.xlane.f32.xlu0 %v893
        %v895 = vpop.xlane.xlu0 %894
        %v896 = vadd.f32 %v844, %v846
        %897 = vadd.xlane.f32.xlu0 %v896
        %v898 = vpop.xlane.xlu0 %897
        %v899 = vadd.f32 %v848, %v850
        %900 = vadd.xlane.f32.xlu0 %v899
        %v901 = vpop.xlane.xlu0 %900
        %v902 = vadd.f32 %v852, %v854
        %903 = vadd.xlane.f32.xlu0 %v902
        %v904 = vpop.xlane.xlu0 %903
        %v905 = vadd.f32 %v856, %v858
        %906 = vadd.xlane.f32.xlu0 %v905
        %v907 = vpop.xlane.xlu0 %906
        %v908 = vadd.f32 %v860, %v862
        %909 = vadd.xlane.f32.xlu0 %v908
        %v910 = vpop.xlane.xlu0 %909
        %911 = vset.pattern.permute.xlu0 0
        %912 = vperm.xlu0 %911, %v596
        %v913 = vpop.permute.xlu0 %912
        %914 = vset.pattern.permute.xlu0 0
        %915 = vperm.xlu0 %914, %v597
        %v916 = vpop.permute.xlu0 %915
        %917 = vset.pattern.permute.xlu0 0
        %918 = vperm.xlu0 %917, %v598
        %v919 = vpop.permute.xlu0 %918
        %920 = vset.pattern.permute.xlu0 0
        %921 = vperm.xlu0 %920, %v599
        %v922 = vpop.permute.xlu0 %921
        %923 = vset.pattern.permute.xlu0 0
        %924 = vperm.xlu0 %923, %v600
        %v925 = vpop.permute.xlu0 %924
        %926 = vset.pattern.permute.xlu0 0
        %927 = vperm.xlu0 %926, %v601
        %v928 = vpop.permute.xlu0 %927
        %929 = vset.pattern.permute.xlu0 0
        %930 = vperm.xlu0 %929, %v602
        %v931 = vpop.permute.xlu0 %930
        %932 = vset.pattern.permute.xlu0 0
        %933 = vperm.xlu0 %932, %v603
        %v934 = vpop.permute.xlu0 %933
        %935 = vset.pattern.permute.xlu0 0
        %936 = vperm.xlu0 %935, %v604
        %v937 = vpop.permute.xlu0 %936
        %938 = vset.pattern.permute.xlu0 0
        %939 = vperm.xlu0 %938, %v605
        %v940 = vpop.permute.xlu0 %939
        %941 = vset.pattern.permute.xlu0 0
        %942 = vperm.xlu0 %941, %v606
        %v943 = vpop.permute.xlu0 %942
        %944 = vset.pattern.permute.xlu0 0
        %945 = vperm.xlu0 %944, %v607
        %v946 = vpop.permute.xlu0 %945
        %947 = vset.pattern.permute.xlu0 0
        %948 = vperm.xlu0 %947, %v608
        %v949 = vpop.permute.xlu0 %948
        %950 = vset.pattern.permute.xlu0 0
        %951 = vperm.xlu0 %950, %v609
        %v952 = vpop.permute.xlu0 %951
        %953 = vset.pattern.permute.xlu0 0
        %954 = vperm.xlu0 %953, %v610
        %v955 = vpop.permute.xlu0 %954
        %956 = vset.pattern.permute.xlu0 0
        %957 = vperm.xlu0 %956, %v611
        %v958 = vpop.permute.xlu0 %957
        %vm959 = vcmp.eq.s32.totalorder %v621, %v913
        %vm960 = vcmp.eq.s32.totalorder %v622, %v913
        %vm961 = vcmp.eq.s32.totalorder %v621, %v916
        %vm962 = vcmp.eq.s32.totalorder %v622, %v916
        %vm963 = vcmp.eq.s32.totalorder %v621, %v919
        %vm964 = vcmp.eq.s32.totalorder %v622, %v919
        %vm965 = vcmp.eq.s32.totalorder %v621, %v922
        %vm966 = vcmp.eq.s32.totalorder %v622, %v922
        %vm967 = vcmp.eq.s32.totalorder %v621, %v925
        %vm968 = vcmp.eq.s32.totalorder %v622, %v925
        %vm969 = vcmp.eq.s32.totalorder %v621, %v928
        %vm970 = vcmp.eq.s32.totalorder %v622, %v928
        %vm971 = vcmp.eq.s32.totalorder %v621, %v931
        %vm972 = vcmp.eq.s32.totalorder %v622, %v931
        %vm973 = vcmp.eq.s32.totalorder %v621, %v934
        %vm974 = vcmp.eq.s32.totalorder %v622, %v934
        %vm975 = vcmp.eq.s32.totalorder %v621, %v937
        %vm976 = vcmp.eq.s32.totalorder %v622, %v937
        %vm977 = vcmp.eq.s32.totalorder %v621, %v940
        %vm978 = vcmp.eq.s32.totalorder %v622, %v940
        %vm979 = vcmp.eq.s32.totalorder %v621, %v943
        %vm980 = vcmp.eq.s32.totalorder %v622, %v943
        %vm981 = vcmp.eq.s32.totalorder %v621, %v946
        %vm982 = vcmp.eq.s32.totalorder %v622, %v946
        %vm983 = vcmp.eq.s32.totalorder %v621, %v949
        %vm984 = vcmp.eq.s32.totalorder %v622, %v949
        %vm985 = vcmp.eq.s32.totalorder %v621, %v952
        %vm986 = vcmp.eq.s32.totalorder %v622, %v952
        %vm987 = vcmp.eq.s32.totalorder %v621, %v955
        %vm988 = vcmp.eq.s32.totalorder %v622, %v955
        %vm989 = vcmp.eq.s32.totalorder %v621, %v958
        %vm990 = vcmp.eq.s32.totalorder %v622, %v958
        %v991 = vsel %vm959, %v564, 0.0
        %v992 = vsel %vm960, %v565, 0.0
        %v993 = vsel %vm961, %v566, 0.0
        %v994 = vsel %vm962, %v567, 0.0
        %v995 = vsel %vm963, %v568, 0.0
        %v996 = vsel %vm964, %v569, 0.0
        %v997 = vsel %vm965, %v570, 0.0
        %v998 = vsel %vm966, %v571, 0.0
        %v999 = vsel %vm967, %v572, 0.0
        %v1000 = vsel %vm968, %v573, 0.0
        %v1001 = vsel %vm969, %v574, 0.0
        %v1002 = vsel %vm970, %v575, 0.0
        %v1003 = vsel %vm971, %v576, 0.0
        %v1004 = vsel %vm972, %v577, 0.0
        %v1005 = vsel %vm973, %v578, 0.0
        %v1006 = vsel %vm974, %v579, 0.0
        %v1007 = vsel %vm975, %v580, 0.0
        %v1008 = vsel %vm976, %v581, 0.0
        %v1009 = vsel %vm977, %v582, 0.0
        %v1010 = vsel %vm978, %v583, 0.0
        %v1011 = vsel %vm979, %v584, 0.0
        %v1012 = vsel %vm980, %v585, 0.0
        %v1013 = vsel %vm981, %v586, 0.0
        %v1014 = vsel %vm982, %v587, 0.0
        %v1015 = vsel %vm983, %v588, 0.0
        %v1016 = vsel %vm984, %v589, 0.0
        %v1017 = vsel %vm985, %v590, 0.0
        %v1018 = vsel %vm986, %v591, 0.0
        %v1019 = vsel %vm987, %v592, 0.0
        %v1020 = vsel %vm988, %v593, 0.0
        %v1021 = vsel %vm989, %v594, 0.0
        %v1022 = vsel %vm990, %v595, 0.0
        %v1023 = vadd.f32 %v991, %v992
        %1024 = vadd.xlane.f32.xlu0 %v1023
        %v1025 = vpop.xlane.xlu0 %1024
        %v1026 = vadd.f32 %v993, %v994
        %1027 = vadd.xlane.f32.xlu0 %v1026
        %v1028 = vpop.xlane.xlu0 %1027
        %v1029 = vadd.f32 %v995, %v996
        %1030 = vadd.xlane.f32.xlu0 %v1029
        %v1031 = vpop.xlane.xlu0 %1030
        %v1032 = vadd.f32 %v997, %v998
        %1033 = vadd.xlane.f32.xlu0 %v1032
        %v1034 = vpop.xlane.xlu0 %1033
        %v1035 = vadd.f32 %v999, %v1000
        %1036 = vadd.xlane.f32.xlu0 %v1035
        %v1037 = vpop.xlane.xlu0 %1036
        %v1038 = vadd.f32 %v1001, %v1002
        %1039 = vadd.xlane.f32.xlu0 %v1038
        %v1040 = vpop.xlane.xlu0 %1039
        %v1041 = vadd.f32 %v1003, %v1004
        %1042 = vadd.xlane.f32.xlu0 %v1041
        %v1043 = vpop.xlane.xlu0 %1042
        %v1044 = vadd.f32 %v1005, %v1006
        %1045 = vadd.xlane.f32.xlu0 %v1044
        %v1046 = vpop.xlane.xlu0 %1045
        %v1047 = vadd.f32 %v1007, %v1008
        %1048 = vadd.xlane.f32.xlu0 %v1047
        %v1049 = vpop.xlane.xlu0 %1048
        %v1050 = vadd.f32 %v1009, %v1010
        %1051 = vadd.xlane.f32.xlu0 %v1050
        %v1052 = vpop.xlane.xlu0 %1051
        %v1053 = vadd.f32 %v1011, %v1012
        %1054 = vadd.xlane.f32.xlu0 %v1053
        %v1055 = vpop.xlane.xlu0 %1054
        %v1056 = vadd.f32 %v1013, %v1014
        %1057 = vadd.xlane.f32.xlu0 %v1056
        %v1058 = vpop.xlane.xlu0 %1057
        %v1059 = vadd.f32 %v1015, %v1016
        %1060 = vadd.xlane.f32.xlu0 %v1059
        %v1061 = vpop.xlane.xlu0 %1060
        %v1062 = vadd.f32 %v1017, %v1018
        %1063 = vadd.xlane.f32.xlu0 %v1062
        %v1064 = vpop.xlane.xlu0 %1063
        %v1065 = vadd.f32 %v1019, %v1020
        %1066 = vadd.xlane.f32.xlu0 %v1065
        %v1067 = vpop.xlane.xlu0 %1066
        %v1068 = vadd.f32 %v1021, %v1022
        %1069 = vadd.xlane.f32.xlu0 %v1068
        %v1070 = vpop.xlane.xlu0 %1069
        %v1071 = vlog2.pop %v865
        %v1072 = vmul.f32 %v1071, 0.6931472
        %v1073 = vlog2.pop %v868
        %v1074 = vmul.f32 %v1073, 0.6931472
        %v1075 = vlog2.pop %v871
        %v1076 = vmul.f32 %v1075, 0.6931472
        %v1077 = vlog2.pop %v874
        %v1078 = vmul.f32 %v1077, 0.6931472
        %v1079 = vlog2.pop %v877
        %v1080 = vmul.f32 %v1079, 0.6931472
        %v1081 = vlog2.pop %v880
        %v1082 = vmul.f32 %v1081, 0.6931472
        %v1083 = vlog2.pop %v883
        %v1084 = vmul.f32 %v1083, 0.6931472
        %v1085 = vlog2.pop %v886
        %v1086 = vmul.f32 %v1085, 0.6931472
        %v1087 = vlog2.pop %v889
        %v1088 = vmul.f32 %v1087, 0.6931472
        %v1089 = vlog2.pop %v892
        %v1090 = vmul.f32 %v1089, 0.6931472
        %v1091 = vlog2.pop %v895
        %v1092 = vmul.f32 %v1091, 0.6931472
        %v1093 = vlog2.pop %v898
        %v1094 = vmul.f32 %v1093, 0.6931472
        %v1095 = vlog2.pop %v901
        %v1096 = vmul.f32 %v1095, 0.6931472
        %v1097 = vlog2.pop %v904
        %v1098 = vmul.f32 %v1097, 0.6931472
        %v1099 = vlog2.pop %v907
        %v1100 = vmul.f32 %v1099, 0.6931472
        %v1101 = vlog2.pop %v910
        %v1102 = vmul.f32 %v1101, 0.6931472
        %v1103 = vadd.f32 %v721, %v1072
        %v1104 = vadd.f32 %v724, %v1074
        %v1105 = vadd.f32 %v727, %v1076
        %v1106 = vadd.f32 %v730, %v1078
        %v1107 = vadd.f32 %v733, %v1080
        %v1108 = vadd.f32 %v736, %v1082
        %v1109 = vadd.f32 %v739, %v1084
        %v1110 = vadd.f32 %v742, %v1086
        %v1111 = vadd.f32 %v745, %v1088
        %v1112 = vadd.f32 %v748, %v1090
        %v1113 = vadd.f32 %v751, %v1092
        %v1114 = vadd.f32 %v754, %v1094
        %v1115 = vadd.f32 %v757, %v1096
        %v1116 = vadd.f32 %v760, %v1098
        %v1117 = vadd.f32 %v763, %v1100
        %v1118 = vadd.f32 %v766, %v1102
        %vm1119 = vcmp.eq.s32.totalorder %v596, 4294967196
        %vm1120 = vcmp.eq.s32.totalorder %v597, 4294967196
        %vm1121 = vcmp.eq.s32.totalorder %v598, 4294967196
        %vm1122 = vcmp.eq.s32.totalorder %v599, 4294967196
        %vm1123 = vcmp.eq.s32.totalorder %v600, 4294967196
        %vm1124 = vcmp.eq.s32.totalorder %v601, 4294967196
        %vm1125 = vcmp.eq.s32.totalorder %v602, 4294967196
        %vm1126 = vcmp.eq.s32.totalorder %v603, 4294967196
        %vm1127 = vcmp.eq.s32.totalorder %v604, 4294967196
        %vm1128 = vcmp.eq.s32.totalorder %v605, 4294967196
        %vm1129 = vcmp.eq.s32.totalorder %v606, 4294967196
        %vm1130 = vcmp.eq.s32.totalorder %v607, 4294967196
        %vm1131 = vcmp.eq.s32.totalorder %v608, 4294967196
        %vm1132 = vcmp.eq.s32.totalorder %v609, 4294967196
        %vm1133 = vcmp.eq.s32.totalorder %v610, 4294967196
        %vm1134 = vcmp.eq.s32.totalorder %v611, 4294967196
        %v1135 = vsub.f32 %v1103, %v1025
        %v1136 = vsub.f32 %v1104, %v1028
        %v1137 = vsub.f32 %v1105, %v1031
        %v1138 = vsub.f32 %v1106, %v1034
        %v1139 = vsub.f32 %v1107, %v1037
        %v1140 = vsub.f32 %v1108, %v1040
        %v1141 = vsub.f32 %v1109, %v1043
        %v1142 = vsub.f32 %v1110, %v1046
        %v1143 = vsub.f32 %v1111, %v1049
        %v1144 = vsub.f32 %v1112, %v1052
        %v1145 = vsub.f32 %v1113, %v1055
        %v1146 = vsub.f32 %v1114, %v1058
        %v1147 = vsub.f32 %v1115, %v1061
        %v1148 = vsub.f32 %v1116, %v1064
        %v1149 = vsub.f32 %v1117, %v1067
        %v1150 = vsub.f32 %v1118, %v1070
        %v1151 = vsel %vm1119, 0.0, %v1135
        %v1152 = vsel %vm1120, 0.0, %v1136
        %v1153 = vsel %vm1121, 0.0, %v1137
        %v1154 = vsel %vm1122, 0.0, %v1138
        %v1155 = vsel %vm1123, 0.0, %v1139
        %v1156 = vsel %vm1124, 0.0, %v1140
        %v1157 = vsel %vm1125, 0.0, %v1141
        %v1158 = vsel %vm1126, 0.0, %v1142
        %v1159 = vsel %vm1127, 0.0, %v1143
        %v1160 = vsel %vm1128, 0.0, %v1144
        %v1161 = vsel %vm1129, 0.0, %v1145
        %v1162 = vsel %vm1130, 0.0, %v1146
        %v1163 = vsel %vm1131, 0.0, %v1147
        %v1164 = vsel %vm1132, 0.0, %v1148
        %v1165 = vsel %vm1133, 0.0, %v1149
        %v1166 = vsel %vm1134, 0.0, %v1150
        %1183 = vset.pattern.permute.xlu0 0
        %1184 = vperm.xlu0 %1183, %v1151
        %v1185 = vpop.permute.xlu0 %1184
        %1186 = vset.pattern.permute.xlu0 0
        %1187 = vperm.xlu0 %1186, %v1152
        %v1188 = vpop.permute.xlu0 %1187
        %1189 = vset.pattern.permute.xlu0 0
        %1190 = vperm.xlu0 %1189, %v1153
        %v1191 = vpop.permute.xlu0 %1190
        %1192 = vset.pattern.permute.xlu0 0
        %1193 = vperm.xlu0 %1192, %v1154
        %v1194 = vpop.permute.xlu0 %1193
        %1195 = vset.pattern.permute.xlu0 0
        %1196 = vperm.xlu0 %1195, %v1155
        %v1197 = vpop.permute.xlu0 %1196
        %1198 = vset.pattern.permute.xlu0 0
        %1199 = vperm.xlu0 %1198, %v1156
        %v1200 = vpop.permute.xlu0 %1199
        %1201 = vset.pattern.permute.xlu0 0
        %1202 = vperm.xlu0 %1201, %v1157
        %v1203 = vpop.permute.xlu0 %1202
        %1204 = vset.pattern.permute.xlu0 0
        %1205 = vperm.xlu0 %1204, %v1158
        %v1206 = vpop.permute.xlu0 %1205
        %1207 = vset.pattern.permute.xlu0 0
        %1208 = vperm.xlu0 %1207, %v1159
        %v1209 = vpop.permute.xlu0 %1208
        %1210 = vset.pattern.permute.xlu0 0
        %1211 = vperm.xlu0 %1210, %v1160
        %v1212 = vpop.permute.xlu0 %1211
        %1213 = vset.pattern.permute.xlu0 0
        %1214 = vperm.xlu0 %1213, %v1161
        %v1215 = vpop.permute.xlu0 %1214
        %1216 = vset.pattern.permute.xlu0 0
        %1217 = vperm.xlu0 %1216, %v1162
        %v1218 = vpop.permute.xlu0 %1217
        %1219 = vset.pattern.permute.xlu0 0
        %1220 = vperm.xlu0 %1219, %v1163
        %v1221 = vpop.permute.xlu0 %1220
        %1222 = vset.pattern.permute.xlu0 0
        %1223 = vperm.xlu0 %1222, %v1164
        %v1224 = vpop.permute.xlu0 %1223
        %1225 = vset.pattern.permute.xlu0 0
        %1226 = vperm.xlu0 %1225, %v1165
        %v1227 = vpop.permute.xlu0 %1226
        %1228 = vset.pattern.permute.xlu0 0
        %1229 = vperm.xlu0 %1228, %v1166
        %v1230 = vpop.permute.xlu0 %1229
        %v1231 = vlaneseq
        %v1232 = vshrl.u32 %v1231, 7
        %v1233 = vsub.s32 %v621, %v1232
        %v1234 = vrot.slane %v1185, %v1233
        %v1235 = vadd.s32 %v621, 4294967288
        %v1236 = vlaneseq
        %v1237 = vshrl.u32 %v1236, 7
        %v1238 = vsub.s32 %v1235, %v1237
        %v1239 = vrot.slane %v1188, %v1238
        %vm1240 = vcmask 130112
        %v1241 = vsel %vm1240, %v1239, %v1234
        %v1242 = vadd.s32 %v621, 4294967280
        %v1243 = vlaneseq
        %v1244 = vshrl.u32 %v1243, 7
        %v1245 = vsub.s32 %v1242, %v1244
        %v1246 = vrot.slane %v1191, %v1245
        %vm1247 = vcmask 195712
        %v1248 = vsel %vm1247, %v1246, %v1241
        %v1249 = vadd.s32 %v621, 4294967272
        %v1250 = vlaneseq
        %v1251 = vshrl.u32 %v1250, 7
        %v1252 = vsub.s32 %v1249, %v1251
        %v1253 = vrot.slane %v1194, %v1252
        %vm1254 = vcmask 261312
        %v1255 = vsel %vm1254, %v1253, %v1248
        %v1256 = vlaneseq
        %v1257 = vshrl.u32 %v1256, 7
        %v1258 = vsub.s32 %v621, %v1257
        %v1259 = vrot.slane %v1197, %v1258
        %v1260 = vlaneseq
        %v1261 = vshrl.u32 %v1260, 7
        %v1262 = vsub.s32 %v1235, %v1261
        %v1263 = vrot.slane %v1200, %v1262
        %v1264 = vsel %vm1240, %v1263, %v1259
        %v1265 = vlaneseq
        %v1266 = vshrl.u32 %v1265, 7
        %v1267 = vsub.s32 %v1242, %v1266
        %v1268 = vrot.slane %v1203, %v1267
        %v1269 = vsel %vm1247, %v1268, %v1264
        %v1270 = vlaneseq
        %v1271 = vshrl.u32 %v1270, 7
        %v1272 = vsub.s32 %v1249, %v1271
        %v1273 = vrot.slane %v1206, %v1272
        %v1274 = vsel %vm1254, %v1273, %v1269
        %v1275 = vlaneseq
        %v1276 = vshrl.u32 %v1275, 7
        %v1277 = vsub.s32 %v621, %v1276
        %v1278 = vrot.slane %v1209, %v1277
        %v1279 = vlaneseq
        %v1280 = vshrl.u32 %v1279, 7
        %v1281 = vsub.s32 %v1235, %v1280
        %v1282 = vrot.slane %v1212, %v1281
        %v1283 = vsel %vm1240, %v1282, %v1278
        %v1284 = vlaneseq
        %v1285 = vshrl.u32 %v1284, 7
        %v1286 = vsub.s32 %v1242, %v1285
        %v1287 = vrot.slane %v1215, %v1286
        %v1288 = vsel %vm1247, %v1287, %v1283
        %v1289 = vlaneseq
        %v1290 = vshrl.u32 %v1289, 7
        %v1291 = vsub.s32 %v1249, %v1290
        %v1292 = vrot.slane %v1218, %v1291
        %v1293 = vsel %vm1254, %v1292, %v1288
        %v1294 = vlaneseq
        %v1295 = vshrl.u32 %v1294, 7
        %v1296 = vsub.s32 %v621, %v1295
        %v1297 = vrot.slane %v1221, %v1296
        %v1298 = vlaneseq
        %v1299 = vshrl.u32 %v1298, 7
        %v1300 = vsub.s32 %v1235, %v1299
        %v1301 = vrot.slane %v1224, %v1300
        %v1302 = vsel %vm1240, %v1301, %v1297
        %v1303 = vlaneseq
        %v1304 = vshrl.u32 %v1303, 7
        %v1305 = vsub.s32 %v1242, %v1304
        %v1306 = vrot.slane %v1227, %v1305
        %v1307 = vsel %vm1247, %v1306, %v1302
        %v1308 = vlaneseq
        %v1309 = vshrl.u32 %v1308, 7
        %v1310 = vsub.s32 %v1249, %v1309
        %v1311 = vrot.slane %v1230, %v1310
        %v1312 = vsel %vm1254, %v1311, %v1307
        %vm1313 = vcmask 1041409
        %v1314 = vsel %vm1313, %v1274, %v1255
        %vm1315 = vcmask 1042434
        %v1316 = vsel %vm1315, %v1293, %v1314
        %vm1317 = vcmask 1043459
        %v1318 = vsel %vm1317, %v1312, %v1316
        %1320 = vxpose.xlu0.b32.start [1/16] %v1318, 128
        %1321 = vxpose.xlu0.b32.cont [2/16] 0.0, 128
        %1322 = vxpose.xlu0.b32.cont [3/16] 0.0, 128
        %1323 = vxpose.xlu0.b32.cont [4/16] 0.0, 128
        %1324 = vxpose.xlu0.b32.cont [5/16] 0.0, 128
        %1325 = vxpose.xlu0.b32.cont [6/16] 0.0, 128
        %1326 = vxpose.xlu0.b32.cont [7/16] 0.0, 128
        %1327 = vxpose.xlu0.b32.cont [8/16] 0.0, 128
        %1328 = vxpose.xlu0.b32.cont [9/16] 0.0, 128
        %1329 = vxpose.xlu0.b32.cont [10/16] 0.0, 128
        %1330 = vxpose.xlu0.b32.cont [11/16] 0.0, 128
        %1331 = vxpose.xlu0.b32.cont [12/16] 0.0, 128
        %1332 = vxpose.xlu0.b32.cont [13/16] 0.0, 128
        %1333 = vxpose.xlu0.b32.cont [14/16] 0.0, 128
        %1334 = vxpose.xlu0.b32.cont [15/16] 0.0, 128
        %1335 = vxpose.xlu0.b32.end [16/16] 0.0, 128
        %v1336 = vpop.trf.xlu0
        %v1337 = vpop.trf.xlu0
        %v1338 = vpop.trf.xlu0
        %v1339 = vpop.trf.xlu0
        %v1340 = vpop.trf.xlu0
        %v1341 = vpop.trf.xlu0
        %v1342 = vpop.trf.xlu0
        %v1343 = vpop.trf.xlu0
        %v1344 = vpop.trf.xlu0
        %v1345 = vpop.trf.xlu0
        %v1346 = vpop.trf.xlu0
        %v1347 = vpop.trf.xlu0
        %v1348 = vpop.trf.xlu0
        %v1349 = vpop.trf.xlu0
        %v1350 = vpop.trf.xlu0
        %v1351 = vpop.trf.xlu0
        %vm1352 = vcmask 31744
        %1353 = vst.msk [vmem:[%s546] sm:$0xff] %vm1352, %v1336
        %1354 = vst.msk [vmem:[%s546 + $0x8] sm:$0xff] %vm1352, %v1337
        %1355 = vst.msk [vmem:[%s546 + $0x10] sm:$0xff] %vm1352, %v1338
        %1356 = vst.msk [vmem:[%s546 + $0x18] sm:$0xff] %vm1352, %v1339
        %s1357 = smul.u32 4, %s15
        %p1358 = scmp.lt.s32.totalorder %s1357, 7
        %s1359 = scalar_select %p1358, %s1357, 7
        %s1360 = smul.addr %s1359, 8
        %s1361 = scalar_lea.vmem %s4, %s1360
        // Predicated region
        $region127: #{tpu_custom_call.1} parent=117 // pred_check
          %p1362 = pneg %p137
        $region128: #{tpu_custom_call.1} parent=117 // pred_check_branch
          %1364 = sbr.rel (%p1362) target = $region130
        $region129: #{tpu_custom_call.1} parent=117 // pred_region
          %s1365 = smul.u32 4, %s15
        $region130: #{tpu_custom_call.1} parent=117 // pred_fallthru
          _
      $region118: #{tpu_custom_call.1} parent=5 // pred_fallthru
        _
      %p1366 = scmp.le.s32.totalorder 2, %s10
      // Predicated region
      $region131: #{tpu_custom_call.1} parent=5 // pred_check
        %p1367 = pneg %p1366
      $region132: #{tpu_custom_call.1} parent=5 // pred_check_branch
        %1369 = sbr.rel (%p1367) target = $region134
      $region133: #{tpu_custom_call.1} parent=5 // pred_region
        %s1370 = ssub.s32 %s10, 2
        // Predicated region
        $region135: #{tpu_custom_call.1} parent=133 // pred_check
          %p1371 = pneg %p143
        $region136: #{tpu_custom_call.1} parent=133 // pred_check_branch
          %1373 = sbr.rel (%p1371) target = $region138
        $region137: #{tpu_custom_call.1} parent=133 // pred_region
          %s1374 = smul.u32 4, %s16
          %p1375 = scmp.lt.s32.totalorder %s1374, 7
          %s1376 = scalar_select %p1375, %s1374, 7
          %s1377 = smul.addr %s1376, 8
          %s1378 = scalar_lea.vmem %s4, %s1377
        $region138: #{tpu_custom_call.1} parent=133 // pred_fallthru
          _
      $region134: #{tpu_custom_call.1} parent=5 // pred_fallthru
        _
    $region6: #{tpu_custom_call.1} parent=1 // loop_footer
      %s14 = sadd.s32 1, %s10
    $region7: #{tpu_custom_call.1} parent=1 // loop_footer_branch
      %9 = sbr.rel target = $region3
    $region8: #{tpu_custom_call.1} parent=1 // loop_exit
      _

</llo_original>
